<compile_context>
chip_gen: v6e
topology: v6e:2x2x1
jax: 0.10.0
libtpu: 0.0.40
codegen_flags: <defaults>
</compile_context>

<pallas_src>
import functools

import jax
import jax.numpy as jnp
from jax.experimental import pallas as pl
from jax.experimental.pallas import tpu as pltpu


def _round_up(x, m):
    return ((x + m - 1) // m) * m


def _cdiv(a, b):
    return -(-a // b)


def _sublane(dtype):
    # Sublane multiple for a dtype on TPU ((8,128) f32 tile; packed dtypes pack sublanes).
    return max(8, 32 // jnp.dtype(dtype).itemsize)


def _sepconv_kernel(*refs, ksize, dilation, tile_h, w_out_p, halo, compute_dtype):
    # refs (halo > 0):  xa_ref, xb_ref, dwk_ref, wpw_ref, bias_ref, o_ref
    # refs (halo == 0): xa_ref,          dwk_ref, wpw_ref, bias_ref, o_ref
    #   xa_ref:  (1, tile_h, Wp, Cin)   main row-tile of the zero-padded NHWC input
    #   xb_ref:  (1, halo,  Wp, Cin)    halo rows just below the main tile (same array)
    #   dwk_ref: (K, K, 1, Cin)  f32    depthwise weight * BN scale, per tap
    #   wpw_ref: (Cin, Cout_p)          pointwise weight (MXU compute dtype)
    #   bias_ref:(1, Cout_p)     f32    BN shift pushed through the pointwise weight
    #   o_ref:   (1, tile_h, W_out_p, Cout_p)
    if halo > 0:
        xa_ref, xb_ref, dwk_ref, wpw_ref, bias_ref, o_ref = refs
        x_rows = jnp.concatenate([xa_ref[0], xb_ref[0]], axis=0)
    else:
        xa_ref, dwk_ref, wpw_ref, bias_ref, o_ref = refs
        x_rows = xa_ref[0]
    # x_rows: (tile_h + halo, Wp, Cin) in the input dtype.

    cin = x_rows.shape[-1]
    cout = o_ref.shape[3]

    # --- Depthwise conv + BN scale on the VPU (no MXU work, no accumulator RMW passes).
    # One sublane column shift per kw (reused across kh); row slices along the leading
    # (non-tiled) axis are free relabels; accumulation in f32.
    dw = None
    for kw in range(ksize):
        cs = kw * dilation
        cols = x_rows[:, cs:cs + w_out_p, :].astype(jnp.float32)
        for kh in range(ksize):
            rd = kh * dilation
            term = cols[rd:rd + tile_h, :, :] * dwk_ref[kh, kw]      # (1, Cin) broadcast
            dw = term if dw is None else dw + term

    # --- Single pointwise matmul for the whole tile: (rows, Cin) @ (Cin, Cout_p) on MXU.
    lhs = dw.reshape(tile_h * w_out_p, cin).astype(compute_dtype)    # aligned relabel
    acc = jnp.dot(lhs, wpw_ref[...], preferred_element_type=jnp.float32)

    # --- Folded BN bias fused into the output store (added exactly once).
    out = acc + bias_ref[...]
    o_ref[...] = out.reshape(1, tile_h, w_out_p, cout).astype(o_ref.dtype)


def separable_conv2d(x_nchw, w_dw, bn_gamma, bn_beta, bn_mean, bn_var, w_pw, *,
                     kernel_size=3, stride=1, padding=1, dilation=1, eps=1e-5,
                     tile_h=None, compute_dtype=None):
    """SeparableConv2d forward (inference-mode BatchNorm).

    x_nchw: (B, Cin, H, W);  w_dw: (Cin, 1, K, K);  w_pw: (Cout, Cin, 1, 1).
    Returns (B, Cout, H_out, W_out) in x_nchw.dtype.
    """
    # TODO(synk): strided depthwise conv not implemented in-kernel (module default stride=1).
    assert stride == 1
    B, Cin, H, W = x_nchw.shape
    Cout = w_pw.shape[0]
    K = kernel_size
    assert w_dw.shape == (Cin, 1, K, K) and w_pw.shape == (Cout, Cin, 1, 1)

    halo = dilation * (K - 1)
    H_out = H + 2 * padding - halo
    W_out = W + 2 * padding - halo
    assert H_out > 0 and W_out > 0

    out_dtype = x_nchw.dtype
    if compute_dtype is None:  # bf16 MXU operands iff the activations are bf16
        compute_dtype = jnp.bfloat16 if out_dtype == jnp.bfloat16 else jnp.float32

    f32 = jnp.float32
    # --- Fold BN into the depthwise weights (scale) and a single pointwise bias (shift).
    scale = bn_gamma.astype(f32) / jnp.sqrt(bn_var.astype(f32) + eps)            # (Cin,)
    shift = bn_beta.astype(f32) - bn_mean.astype(f32) * scale                    # (Cin,)
    wpw = jnp.transpose(w_pw[:, :, 0, 0], (1, 0)).astype(f32)                    # (Cin, Cout)
    dwk = jnp.transpose(w_dw[:, 0, :, :], (1, 2, 0)).astype(f32) * scale         # (K, K, Cin)
    dwk = dwk.reshape(K, K, 1, Cin)
    bias = (shift @ wpw).reshape(1, Cout)                                        # (1, Cout)

    # --- Lane/sublane-aligned output tile: Cout -> x128 lanes, W_out -> sublane multiple.
    Cout_p = _round_up(Cout, 128)
    W_out_p = _round_up(W_out, _sublane(out_dtype))
    if Cout_p != Cout:
        wpw = jnp.pad(wpw, ((0, 0), (0, Cout_p - Cout)))
        bias = jnp.pad(bias, ((0, 0), (0, Cout_p - Cout)))
    wpw = wpw.astype(compute_dtype)
    bias = bias.astype(f32)

    # --- Padded input geometry (Cin deliberately NOT lane-padded in HBM).
    Wp = W_out_p + halo
    Hp_min = H + 2 * padding
    in_itemsize = jnp.dtype(out_dtype).itemsize
    cd_itemsize = jnp.dtype(compute_dtype).itemsize
    cin_lanes = _round_up(Cin, 128)                 # VMEM lane padding of the channel axis
    wp_sub = _round_up(Wp, _sublane(out_dtype))
    row_unit = halo if halo > 0 else 1

    def footprint(th):
        """Per-grid-step VMEM bytes, counting the 128-lane padding of Cin in VMEM."""
        rows = th * W_out_p
        f = 0
        # double-buffered input streams (main tile + halo view)
        f += 2 * th * wp_sub * cin_lanes * in_itemsize
        f += 2 * halo * wp_sub * cin_lanes * in_itemsize
        # double-buffered output stream
        f += 2 * th * W_out_p * Cout_p * in_itemsize
        # weights / bias (worst case double-buffered; small)
        f += 2 * (_round_up(Cin, _sublane(compute_dtype)) * Cout_p * cd_itemsize
                  + K * K * 8 * 128 * 4 + 8 * Cout_p * 4)
        # in-kernel intermediates: concat'd rows, one shifted f32 column view,
        # depthwise f32 accumulator, matmul lhs and f32 matmul result
        f += (th + halo) * wp_sub * cin_lanes * in_itemsize
        f += (th + halo) * W_out_p * cin_lanes * 4
        f += rows * cin_lanes * 4
        f += rows * cin_lanes * cd_itemsize
        f += rows * Cout_p * 4
        return f

    # --- Per-generation VMEM budget (v7x: 64 MiB physical; v5e/v6e: 128 MiB).
    try:
        vmem_cap = int(getattr(pltpu.get_tpu_info(), "vmem_capacity_bytes", 128 << 20))
    except Exception:
        vmem_cap = 128 << 20
    small_vmem = vmem_cap <= (64 << 20)
    step_budget = (22 << 20) if small_vmem else (44 << 20)
    limit_cap = (30 << 20) if small_vmem else (80 << 20)

    th_max = max(_round_up(max(H_out, 1), row_unit), row_unit)
    if tile_h is None:
        th = th_max
        if footprint(th) > step_budget:
            base = footprint(row_unit)
            per_row = max((footprint(2 * row_unit) - base) / float(row_unit), 1.0)
            guess = row_unit + int(max(step_budget - base, 0) / per_row)
            th = max(row_unit, (guess // row_unit) * row_unit)
            th = min(th, th_max)
            while th > row_unit and footprint(th) > step_budget:
                th -= row_unit
        tile_h = th
    else:
        tile_h = int(min(max(int(tile_h), 1), th_max))
        tile_h = max(row_unit, _round_up(tile_h, row_unit))
    # TODO(synk): add W / Cout grid axes for very wide rows or deep layers (v7x megacore).

    n_tiles = _cdiv(H_out, tile_h)
    H_out_p = n_tiles * tile_h
    Hp_pad = H_out_p + halo                          # rows of padded input the kernel reads

    # --- Layout glue: NCHW -> NHWC + zero pad (conv halo + tile/lane alignment).
    # TODO(synk): an NHWC entry point with in-kernel edge masking would remove this extra
    #             HBM pass; kept so the public API stays NCHW like the PyTorch module.
    x = jnp.transpose(x_nchw, (0, 2, 3, 1))
    x = jnp.pad(x, ((0, 0),
                    (padding, padding + (Hp_pad - Hp_min)),
                    (padding, padding + (W_out_p - W_out)),
                    (0, 0)))

    vmem_limit = int(min(max(int(1.4 * footprint(tile_h)) + (2 << 20), 16 << 20), limit_cap))

    kernel = functools.partial(_sepconv_kernel, ksize=K, dilation=dilation,
                               tile_h=tile_h, w_out_p=W_out_p, halo=halo,
                               compute_dtype=compute_dtype)

    def run(single_buffer_weights):
        def const_spec(shape):
            idx = lambda b, t: (0,) * len(shape)
            if single_buffer_weights:
                # Constant index_map -> no pipelining benefit; keep one VMEM copy only.
                return pl.BlockSpec(shape, idx, pipeline_mode=pl.Buffered(1))
            return pl.BlockSpec(shape, idx)

        in_specs = [pl.BlockSpec((1, tile_h, Wp, Cin), lambda b, t: (b, t, 0, 0))]
        call_args = [x]
        if halo > 0:
            hb = tile_h // halo
            in_specs.append(pl.BlockSpec((1, halo, Wp, Cin),
                                         lambda b, t: (b, (t + 1) * hb, 0, 0)))
            call_args.append(x)
        in_specs += [const_spec((K, K, 1, Cin)),
                     const_spec((Cin, Cout_p)),
                     const_spec((1, Cout_p))]
        call_args += [dwk, wpw, bias]
        out_specs = pl.BlockSpec((1, tile_h, W_out_p, Cout_p), lambda b, t: (b, t, 0, 0))

        return pl.pallas_call(
            kernel,
            out_shape=jax.ShapeDtypeStruct((B, H_out_p, W_out_p, Cout_p), out_dtype),
            grid=(B, n_tiles),
            in_specs=in_specs,
            out_specs=out_specs,
            compiler_params=pltpu.CompilerParams(
                dimension_semantics=("parallel", "parallel"),
                vmem_limit_bytes=vmem_limit),
        )(*call_args)

    try:
        out = run(True)     # single-buffered resident weights (saves VMEM)
    except Exception:
        out = run(False)    # fall back if pipeline_mode / Buffered(1) is unsupported

    out = out[:, :H_out, :W_out, :Cout]
    return jnp.transpose(out, (0, 3, 1, 2))          # back to NCHW


def _reference(x, w_dw, gamma, beta, mean, var, w_pw,
               *, stride=1, padding=1, dilation=1, eps=1e-5):
    dn = ("NCHW", "OIHW", "NCHW")
    y = jax.lax.conv_general_dilated(
        x, w_dw, (stride, stride), [(padding, padding)] * 2,
        rhs_dilation=(dilation, dilation), dimension_numbers=dn,
        feature_group_count=x.shape[1])
    scale = gamma / jnp.sqrt(var + eps)
    y = y * scale[None, :, None, None] + (beta - mean * scale)[None, :, None, None]
    return jax.lax.conv_general_dilated(
        y, w_pw, (1, 1), [(0, 0)] * 2, dimension_numbers=dn)


if __name__ == "__main__":
    B, Cin, H, W, Cout = 2, 4, 16, 16, 8
    configs = [
        # (name, K, padding, dilation, tile_h, input dtype, atol, rtol)
        ("k3_p1_d1_tile8", 3, 1, 1, 8, jnp.float32, 1e-4, 1e-4),
        ("k3_p2_d2_tile4", 3, 2, 2, 4, jnp.float32, 1e-4, 1e-4),
        ("k1_p0_d1_auto", 1, 0, 1, None, jnp.float32, 1e-4, 1e-4),
        ("k3_p1_d1_bf16", 3, 1, 1, 8, jnp.bfloat16, 1e-1, 1e-1),
    ]

    key = jax.random.PRNGKey(0)
    for name, K, padding, dilation, tile_h, in_dtype, atol, rtol in configs:
        key, *ks = jax.random.split(key, 8)
        k0, k1, k2, k3, k4, k5, k6 = ks

        x = jax.random.normal(k0, (B, Cin, H, W), jnp.float32)
        w_dw = jax.random.normal(k1, (Cin, 1, K, K), jnp.float32) * 0.3      # depthwise weight
        w_pw = jax.random.normal(k2, (Cout, Cin, 1, 1), jnp.float32) * 0.3   # pointwise weight
        bn_gamma = 1.0 + 0.1 * jax.random.normal(k3, (Cin,), jnp.float32)
        bn_beta = 0.1 * jax.random.normal(k4, (Cin,), jnp.float32)
        bn_mean = 0.1 * jax.random.normal(k5, (Cin,), jnp.float32)
        bn_var = jnp.abs(jax.random.normal(k6, (Cin,), jnp.float32)) + 0.5

        x_in = x.astype(in_dtype)
        out = separable_conv2d(x_in, w_dw, bn_gamma, bn_beta, bn_mean, bn_var, w_pw,
                               kernel_size=K, stride=1, padding=padding,
                               dilation=dilation, tile_h=tile_h)
        out = jax.block_until_ready(out)

        # f32 reference from the same (possibly bf16-rounded) activations.
        ref = _reference(x_in.astype(jnp.float32), w_dw, bn_gamma, bn_beta, bn_mean,
                         bn_var, w_pw, stride=1, padding=padding, dilation=dilation)
        assert out.shape == ref.shape, (name, out.shape, ref.shape)
        assert jnp.allclose(out.astype(jnp.float32), ref, atol=atol, rtol=rtol), \
            f"mismatch vs lax reference in config {name}"

    print("KERNEL_OK")
</pallas_src>

<mosaic_0001>
module attributes {stable_mosaic.version = 11 : i64} {
  func.func @_sepconv_kernel(%arg0: i32, %arg1: i32, %arg2: memref<1x8x18x4xf32, #tpu.memory_space<vmem>>, %arg3: memref<1x2x18x4xf32, #tpu.memory_space<vmem>>, %arg4: memref<3x3x1x4xf32, #tpu.memory_space<vmem>>, %arg5: memref<4x128xf32, #tpu.memory_space<vmem>>, %arg6: memref<1x128xf32, #tpu.memory_space<vmem>>, %arg7: memref<1x8x16x128xf32, #tpu.memory_space<vmem>>) attributes {dimension_semantics = [#tpu.dimension_semantics<parallel>, #tpu.dimension_semantics<parallel>], iteration_bounds = array<i64: 2, 2>, scalar_prefetch = 0 : i64, scratch_operands = 0 : i64, tpu.core_type = #tpu.core_type<tc>, window_params = [{transform_indices = @transform_0, window_bounds = array<i64: 1, 8, 18, 4>}, {transform_indices = @transform_1, window_bounds = array<i64: 1, 2, 18, 4>}, {pipeline_mode = #tpu.pipeline_mode<synchronous>, transform_indices = @transform_2, window_bounds = array<i64: 3, 3, 1, 4>}, {pipeline_mode = #tpu.pipeline_mode<synchronous>, transform_indices = @transform_3, window_bounds = array<i64: 4, 128>}, {pipeline_mode = #tpu.pipeline_mode<synchronous>, transform_indices = @transform_4, window_bounds = array<i64: 1, 128>}, {transform_indices = @transform_5, window_bounds = array<i64: 1, 8, 16, 128>}]} {
    %c0 = arith.constant 0 : index
    %c0_0 = arith.constant 0 : index
    %c0_1 = arith.constant 0 : index
    %c0_2 = arith.constant 0 : index
    %0 = vector.load %arg2[%c0, %c0_0, %c0_1, %c0_2] : memref<1x8x18x4xf32, #tpu.memory_space<vmem>>, vector<1x8x18x4xf32>
    %1 = vector.shape_cast %0 : vector<1x8x18x4xf32> to vector<8x18x4xf32>
    %c0_3 = arith.constant 0 : index
    %c0_4 = arith.constant 0 : index
    %c0_5 = arith.constant 0 : index
    %c0_6 = arith.constant 0 : index
    %2 = vector.load %arg3[%c0_3, %c0_4, %c0_5, %c0_6] : memref<1x2x18x4xf32, #tpu.memory_space<vmem>>, vector<1x2x18x4xf32>
    %3 = vector.shape_cast %2 : vector<1x2x18x4xf32> to vector<2x18x4xf32>
    %4 = tpu.concatenate %1, %3 in 0 : vector<8x18x4xf32>, vector<2x18x4xf32> -> vector<10x18x4xf32>
    %5 = vector.extract_strided_slice %4 {offsets = [0, 0, 0], sizes = [10, 16, 4], strides = [1, 1, 1]} : vector<10x18x4xf32> to vector<10x16x4xf32>
    %6 = vector.extract_strided_slice %5 {offsets = [0, 0, 0], sizes = [8, 16, 4], strides = [1, 1, 1]} : vector<10x16x4xf32> to vector<8x16x4xf32>
    %c0_7 = arith.constant 0 : index
    %c0_8 = arith.constant 0 : index
    %c0_9 = arith.constant 0 : index
    %c0_10 = arith.constant 0 : index
    %7 = vector.load %arg4[%c0_7, %c0_8, %c0_9, %c0_10] : memref<3x3x1x4xf32, #tpu.memory_space<vmem>>, vector<1x1x1x4xf32>
    %8 = vector.shape_cast %7 : vector<1x1x1x4xf32> to vector<1x4xf32>
    %9 = vector.shape_cast %8 : vector<1x4xf32> to vector<1x1x4xf32>
    %10 = vector.broadcast %9 : vector<1x1x4xf32> to vector<8x16x4xf32>
    %11 = arith.mulf %6, %10 : vector<8x16x4xf32>
    %12 = vector.extract_strided_slice %5 {offsets = [1, 0, 0], sizes = [8, 16, 4], strides = [1, 1, 1]} : vector<10x16x4xf32> to vector<8x16x4xf32>
    %c1 = arith.constant 1 : index
    %c0_11 = arith.constant 0 : index
    %c0_12 = arith.constant 0 : index
    %c0_13 = arith.constant 0 : index
    %13 = vector.load %arg4[%c1, %c0_11, %c0_12, %c0_13] : memref<3x3x1x4xf32, #tpu.memory_space<vmem>>, vector<1x1x1x4xf32>
    %14 = vector.shape_cast %13 : vector<1x1x1x4xf32> to vector<1x4xf32>
    %15 = vector.shape_cast %14 : vector<1x4xf32> to vector<1x1x4xf32>
    %16 = vector.broadcast %15 : vector<1x1x4xf32> to vector<8x16x4xf32>
    %17 = arith.mulf %12, %16 : vector<8x16x4xf32>
    %18 = arith.addf %11, %17 : vector<8x16x4xf32>
    %19 = vector.extract_strided_slice %5 {offsets = [2, 0, 0], sizes = [8, 16, 4], strides = [1, 1, 1]} : vector<10x16x4xf32> to vector<8x16x4xf32>
    %c2 = arith.constant 2 : index
    %c0_14 = arith.constant 0 : index
    %c0_15 = arith.constant 0 : index
    %c0_16 = arith.constant 0 : index
    %20 = vector.load %arg4[%c2, %c0_14, %c0_15, %c0_16] : memref<3x3x1x4xf32, #tpu.memory_space<vmem>>, vector<1x1x1x4xf32>
    %21 = vector.shape_cast %20 : vector<1x1x1x4xf32> to vector<1x4xf32>
    %22 = vector.shape_cast %21 : vector<1x4xf32> to vector<1x1x4xf32>
    %23 = vector.broadcast %22 : vector<1x1x4xf32> to vector<8x16x4xf32>
    %24 = arith.mulf %19, %23 : vector<8x16x4xf32>
    %25 = arith.addf %18, %24 : vector<8x16x4xf32>
    %26 = vector.extract_strided_slice %4 {offsets = [0, 1, 0], sizes = [10, 16, 4], strides = [1, 1, 1]} : vector<10x18x4xf32> to vector<10x16x4xf32>
    %27 = vector.extract_strided_slice %26 {offsets = [0, 0, 0], sizes = [8, 16, 4], strides = [1, 1, 1]} : vector<10x16x4xf32> to vector<8x16x4xf32>
    %c0_17 = arith.constant 0 : index
    %c1_18 = arith.constant 1 : index
    %c0_19 = arith.constant 0 : index
    %c0_20 = arith.constant 0 : index
    %28 = vector.load %arg4[%c0_17, %c1_18, %c0_19, %c0_20] : memref<3x3x1x4xf32, #tpu.memory_space<vmem>>, vector<1x1x1x4xf32>
    %29 = vector.shape_cast %28 : vector<1x1x1x4xf32> to vector<1x4xf32>
    %30 = vector.shape_cast %29 : vector<1x4xf32> to vector<1x1x4xf32>
    %31 = vector.broadcast %30 : vector<1x1x4xf32> to vector<8x16x4xf32>
    %32 = arith.mulf %27, %31 : vector<8x16x4xf32>
    %33 = arith.addf %25, %32 : vector<8x16x4xf32>
    %34 = vector.extract_strided_slice %26 {offsets = [1, 0, 0], sizes = [8, 16, 4], strides = [1, 1, 1]} : vector<10x16x4xf32> to vector<8x16x4xf32>
    %c1_21 = arith.constant 1 : index
    %c1_22 = arith.constant 1 : index
    %c0_23 = arith.constant 0 : index
    %c0_24 = arith.constant 0 : index
    %35 = vector.load %arg4[%c1_21, %c1_22, %c0_23, %c0_24] : memref<3x3x1x4xf32, #tpu.memory_space<vmem>>, vector<1x1x1x4xf32>
    %36 = vector.shape_cast %35 : vector<1x1x1x4xf32> to vector<1x4xf32>
    %37 = vector.shape_cast %36 : vector<1x4xf32> to vector<1x1x4xf32>
    %38 = vector.broadcast %37 : vector<1x1x4xf32> to vector<8x16x4xf32>
    %39 = arith.mulf %34, %38 : vector<8x16x4xf32>
    %40 = arith.addf %33, %39 : vector<8x16x4xf32>
    %41 = vector.extract_strided_slice %26 {offsets = [2, 0, 0], sizes = [8, 16, 4], strides = [1, 1, 1]} : vector<10x16x4xf32> to vector<8x16x4xf32>
    %c2_25 = arith.constant 2 : index
    %c1_26 = arith.constant 1 : index
    %c0_27 = arith.constant 0 : index
    %c0_28 = arith.constant 0 : index
    %42 = vector.load %arg4[%c2_25, %c1_26, %c0_27, %c0_28] : memref<3x3x1x4xf32, #tpu.memory_space<vmem>>, vector<1x1x1x4xf32>
    %43 = vector.shape_cast %42 : vector<1x1x1x4xf32> to vector<1x4xf32>
    %44 = vector.shape_cast %43 : vector<1x4xf32> to vector<1x1x4xf32>
    %45 = vector.broadcast %44 : vector<1x1x4xf32> to vector<8x16x4xf32>
    %46 = arith.mulf %41, %45 : vector<8x16x4xf32>
    %47 = arith.addf %40, %46 : vector<8x16x4xf32>
    %48 = vector.extract_strided_slice %4 {offsets = [0, 2, 0], sizes = [10, 16, 4], strides = [1, 1, 1]} : vector<10x18x4xf32> to vector<10x16x4xf32>
    %49 = vector.extract_strided_slice %48 {offsets = [0, 0, 0], sizes = [8, 16, 4], strides = [1, 1, 1]} : vector<10x16x4xf32> to vector<8x16x4xf32>
    %c0_29 = arith.constant 0 : index
    %c2_30 = arith.constant 2 : index
    %c0_31 = arith.constant 0 : index
    %c0_32 = arith.constant 0 : index
    %50 = vector.load %arg4[%c0_29, %c2_30, %c0_31, %c0_32] : memref<3x3x1x4xf32, #tpu.memory_space<vmem>>, vector<1x1x1x4xf32>
    %51 = vector.shape_cast %50 : vector<1x1x1x4xf32> to vector<1x4xf32>
    %52 = vector.shape_cast %51 : vector<1x4xf32> to vector<1x1x4xf32>
    %53 = vector.broadcast %52 : vector<1x1x4xf32> to vector<8x16x4xf32>
    %54 = arith.mulf %49, %53 : vector<8x16x4xf32>
    %55 = arith.addf %47, %54 : vector<8x16x4xf32>
    %56 = vector.extract_strided_slice %48 {offsets = [1, 0, 0], sizes = [8, 16, 4], strides = [1, 1, 1]} : vector<10x16x4xf32> to vector<8x16x4xf32>
    %c1_33 = arith.constant 1 : index
    %c2_34 = arith.constant 2 : index
    %c0_35 = arith.constant 0 : index
    %c0_36 = arith.constant 0 : index
    %57 = vector.load %arg4[%c1_33, %c2_34, %c0_35, %c0_36] : memref<3x3x1x4xf32, #tpu.memory_space<vmem>>, vector<1x1x1x4xf32>
    %58 = vector.shape_cast %57 : vector<1x1x1x4xf32> to vector<1x4xf32>
    %59 = vector.shape_cast %58 : vector<1x4xf32> to vector<1x1x4xf32>
    %60 = vector.broadcast %59 : vector<1x1x4xf32> to vector<8x16x4xf32>
    %61 = arith.mulf %56, %60 : vector<8x16x4xf32>
    %62 = arith.addf %55, %61 : vector<8x16x4xf32>
    %63 = vector.extract_strided_slice %48 {offsets = [2, 0, 0], sizes = [8, 16, 4], strides = [1, 1, 1]} : vector<10x16x4xf32> to vector<8x16x4xf32>
    %c2_37 = arith.constant 2 : index
    %c2_38 = arith.constant 2 : index
    %c0_39 = arith.constant 0 : index
    %c0_40 = arith.constant 0 : index
    %64 = vector.load %arg4[%c2_37, %c2_38, %c0_39, %c0_40] : memref<3x3x1x4xf32, #tpu.memory_space<vmem>>, vector<1x1x1x4xf32>
    %65 = vector.shape_cast %64 : vector<1x1x1x4xf32> to vector<1x4xf32>
    %66 = vector.shape_cast %65 : vector<1x4xf32> to vector<1x1x4xf32>
    %67 = vector.broadcast %66 : vector<1x1x4xf32> to vector<8x16x4xf32>
    %68 = arith.mulf %63, %67 : vector<8x16x4xf32>
    %69 = arith.addf %62, %68 : vector<8x16x4xf32>
    %70 = vector.shape_cast %69 : vector<8x16x4xf32> to vector<128x4xf32>
    %c0_41 = arith.constant 0 : index
    %c0_42 = arith.constant 0 : index
    %71 = vector.load %arg5[%c0_41, %c0_42] : memref<4x128xf32, #tpu.memory_space<vmem>>, vector<4x128xf32>
    %cst = arith.constant dense<0.000000e+00> : vector<128x128xf32>
    %72 = tpu.matmul %70, %71, %cst {dimension_numbers = #tpu.dot_dimension_numbers<[1], [0], [0], [1], [0, 0, 1, 1], [], []>} : vector<128x4xf32>, vector<4x128xf32>, vector<128x128xf32> -> vector<128x128xf32>
    %c0_43 = arith.constant 0 : index
    %c0_44 = arith.constant 0 : index
    %73 = vector.load %arg6[%c0_43, %c0_44] : memref<1x128xf32, #tpu.memory_space<vmem>>, vector<1x128xf32>
    %74 = vector.broadcast %73 : vector<1x128xf32> to vector<128x128xf32>
    %75 = arith.addf %72, %74 : vector<128x128xf32>
    %76 = vector.shape_cast %75 : vector<128x128xf32> to vector<1x8x16x128xf32>
    %c0_45 = arith.constant 0 : index
    %c0_46 = arith.constant 0 : index
    %c0_47 = arith.constant 0 : index
    %c0_48 = arith.constant 0 : index
    %77 = vector.load %arg7[%c0_45, %c0_46, %c0_47, %c0_48] : memref<1x8x16x128xf32, #tpu.memory_space<vmem>>, vector<1x8x16x128xf32>
    tpu.vector_store %arg7[%c0_45, %c0_46, %c0_47, %c0_48], %76 {strides = array<i32>} : memref<1x8x16x128xf32, #tpu.memory_space<vmem>>, vector<1x8x16x128xf32>,
    return
  }
  func.func @transform_0(%arg0: i32, %arg1: i32) -> (i32, i32, i32, i32) {
    %c0_i32 = arith.constant 0 : i32
    %c0_i32_0 = arith.constant 0 : i32
    %c0_i32_1 = arith.constant 0 : i32
    return %arg0, %arg1, %c0_i32, %c0_i32_0 : i32, i32, i32, i32
  }
  func.func @transform_1(%arg0: i32, %arg1: i32) -> (i32, i32, i32, i32) {
    %c1_i32 = arith.constant 1 : i32
    %0 = arith.addi %arg1, %c1_i32 : i32
    %c4_i32 = arith.constant 4 : i32
    %1 = arith.muli %0, %c4_i32 : i32
    %c0_i32 = arith.constant 0 : i32
    %c0_i32_0 = arith.constant 0 : i32
    %c0_i32_1 = arith.constant 0 : i32
    return %arg0, %1, %c0_i32, %c0_i32_0 : i32, i32, i32, i32
  }
  func.func @transform_2(%arg0: i32, %arg1: i32) -> (i32, i32, i32, i32) {
    %c0_i32 = arith.constant 0 : i32
    %c0_i32_0 = arith.constant 0 : i32
    %c0_i32_1 = arith.constant 0 : i32
    %c0_i32_2 = arith.constant 0 : i32
    %c0_i32_3 = arith.constant 0 : i32
    return %c0_i32, %c0_i32_0, %c0_i32_1, %c0_i32_2 : i32, i32, i32, i32
  }
  func.func @transform_3(%arg0: i32, %arg1: i32) -> (i32, i32) {
    %c0_i32 = arith.constant 0 : i32
    %c0_i32_0 = arith.constant 0 : i32
    %c0_i32_1 = arith.constant 0 : i32
    return %c0_i32, %c0_i32_0 : i32, i32
  }
  func.func @transform_4(%arg0: i32, %arg1: i32) -> (i32, i32) {
    %c0_i32 = arith.constant 0 : i32
    %c0_i32_0 = arith.constant 0 : i32
    %c0_i32_1 = arith.constant 0 : i32
    return %c0_i32, %c0_i32_0 : i32, i32
  }
  func.func @transform_5(%arg0: i32, %arg1: i32) -> (i32, i32, i32, i32) {
    %c0_i32 = arith.constant 0 : i32
    %c0_i32_0 = arith.constant 0 : i32
    %c0_i32_1 = arith.constant 0 : i32
    return %arg0, %arg1, %c0_i32, %c0_i32_0 : i32, i32, i32, i32
  }
}

module attributes {stable_mosaic.version = 11 : i64} {
  func.func @_sepconv_kernel(%arg0: i32, %arg1: i32, %arg2: memref<1x8x18x4xf32, #tpu.memory_space<vmem>>, %arg3: memref<1x2x18x4xf32, #tpu.memory_space<vmem>>, %arg4: memref<3x3x1x4xf32, #tpu.memory_space<vmem>>, %arg5: memref<4x128xf32, #tpu.memory_space<vmem>>, %arg6: memref<1x128xf32, #tpu.memory_space<vmem>>, %arg7: memref<1x8x16x128xf32, #tpu.memory_space<vmem>>) attributes {dimension_semantics = [#tpu.dimension_semantics<parallel>, #tpu.dimension_semantics<parallel>], iteration_bounds = array<i64: 2, 2>, scalar_prefetch = 0 : i64, scratch_operands = 0 : i64, tpu.core_type = #tpu.core_type<tc>, window_params = [{transform_indices = @transform_0, window_bounds = array<i64: 1, 8, 18, 4>}, {transform_indices = @transform_1, window_bounds = array<i64: 1, 2, 18, 4>}, {pipeline_mode = #tpu.pipeline_mode<synchronous>, transform_indices = @transform_2, window_bounds = array<i64: 3, 3, 1, 4>}, {pipeline_mode = #tpu.pipeline_mode<synchronous>, transform_indices = @transform_3, window_bounds = array<i64: 4, 128>}, {pipeline_mode = #tpu.pipeline_mode<synchronous>, transform_indices = @transform_4, window_bounds = array<i64: 1, 128>}, {transform_indices = @transform_5, window_bounds = array<i64: 1, 8, 16, 128>}]} {
    %c0 = arith.constant 0 : index
    %c0_0 = arith.constant 0 : index
    %c0_1 = arith.constant 0 : index
    %c0_2 = arith.constant 0 : index
    %0 = vector.load %arg2[%c0, %c0_0, %c0_1, %c0_2] : memref<1x8x18x4xf32, #tpu.memory_space<vmem>>, vector<1x8x18x4xf32>
    %1 = vector.shape_cast %0 : vector<1x8x18x4xf32> to vector<8x18x4xf32>
    %c0_3 = arith.constant 0 : index
    %c0_4 = arith.constant 0 : index
    %c0_5 = arith.constant 0 : index
    %c0_6 = arith.constant 0 : index
    %2 = vector.load %arg3[%c0_3, %c0_4, %c0_5, %c0_6] : memref<1x2x18x4xf32, #tpu.memory_space<vmem>>, vector<1x2x18x4xf32>
    %3 = vector.shape_cast %2 : vector<1x2x18x4xf32> to vector<2x18x4xf32>
    %4 = tpu.concatenate %1, %3 in 0 : vector<8x18x4xf32>, vector<2x18x4xf32> -> vector<10x18x4xf32>
    %5 = vector.extract_strided_slice %4 {offsets = [0, 0, 0], sizes = [10, 16, 4], strides = [1, 1, 1]} : vector<10x18x4xf32> to vector<10x16x4xf32>
    %6 = vector.extract_strided_slice %5 {offsets = [0, 0, 0], sizes = [8, 16, 4], strides = [1, 1, 1]} : vector<10x16x4xf32> to vector<8x16x4xf32>
    %c0_7 = arith.constant 0 : index
    %c0_8 = arith.constant 0 : index
    %c0_9 = arith.constant 0 : index
    %c0_10 = arith.constant 0 : index
    %7 = vector.load %arg4[%c0_7, %c0_8, %c0_9, %c0_10] : memref<3x3x1x4xf32, #tpu.memory_space<vmem>>, vector<1x1x1x4xf32>
    %8 = vector.shape_cast %7 : vector<1x1x1x4xf32> to vector<1x4xf32>
    %9 = vector.shape_cast %8 : vector<1x4xf32> to vector<1x1x4xf32>
    %10 = vector.broadcast %9 : vector<1x1x4xf32> to vector<8x16x4xf32>
    %11 = arith.mulf %6, %10 : vector<8x16x4xf32>
    %12 = vector.extract_strided_slice %5 {offsets = [1, 0, 0], sizes = [8, 16, 4], strides = [1, 1, 1]} : vector<10x16x4xf32> to vector<8x16x4xf32>
    %c1 = arith.constant 1 : index
    %c0_11 = arith.constant 0 : index
    %c0_12 = arith.constant 0 : index
    %c0_13 = arith.constant 0 : index
    %13 = vector.load %arg4[%c1, %c0_11, %c0_12, %c0_13] : memref<3x3x1x4xf32, #tpu.memory_space<vmem>>, vector<1x1x1x4xf32>
    %14 = vector.shape_cast %13 : vector<1x1x1x4xf32> to vector<1x4xf32>
    %15 = vector.shape_cast %14 : vector<1x4xf32> to vector<1x1x4xf32>
    %16 = vector.broadcast %15 : vector<1x1x4xf32> to vector<8x16x4xf32>
    %17 = arith.mulf %12, %16 : vector<8x16x4xf32>
    %18 = arith.addf %11, %17 : vector<8x16x4xf32>
    %19 = vector.extract_strided_slice %5 {offsets = [2, 0, 0], sizes = [8, 16, 4], strides = [1, 1, 1]} : vector<10x16x4xf32> to vector<8x16x4xf32>
    %c2 = arith.constant 2 : index
    %c0_14 = arith.constant 0 : index
    %c0_15 = arith.constant 0 : index
    %c0_16 = arith.constant 0 : index
    %20 = vector.load %arg4[%c2, %c0_14, %c0_15, %c0_16] : memref<3x3x1x4xf32, #tpu.memory_space<vmem>>, vector<1x1x1x4xf32>
    %21 = vector.shape_cast %20 : vector<1x1x1x4xf32> to vector<1x4xf32>
    %22 = vector.shape_cast %21 : vector<1x4xf32> to vector<1x1x4xf32>
    %23 = vector.broadcast %22 : vector<1x1x4xf32> to vector<8x16x4xf32>
    %24 = arith.mulf %19, %23 : vector<8x16x4xf32>
    %25 = arith.addf %18, %24 : vector<8x16x4xf32>
    %26 = vector.extract_strided_slice %4 {offsets = [0, 1, 0], sizes = [10, 16, 4], strides = [1, 1, 1]} : vector<10x18x4xf32> to vector<10x16x4xf32>
    %27 = vector.extract_strided_slice %26 {offsets = [0, 0, 0], sizes = [8, 16, 4], strides = [1, 1, 1]} : vector<10x16x4xf32> to vector<8x16x4xf32>
    %c0_17 = arith.constant 0 : index
    %c1_18 = arith.constant 1 : index
    %c0_19 = arith.constant 0 : index
    %c0_20 = arith.constant 0 : index
    %28 = vector.load %arg4[%c0_17, %c1_18, %c0_19, %c0_20] : memref<3x3x1x4xf32, #tpu.memory_space<vmem>>, vector<1x1x1x4xf32>
    %29 = vector.shape_cast %28 : vector<1x1x1x4xf32> to vector<1x4xf32>
    %30 = vector.shape_cast %29 : vector<1x4xf32> to vector<1x1x4xf32>
    %31 = vector.broadcast %30 : vector<1x1x4xf32> to vector<8x16x4xf32>
    %32 = arith.mulf %27, %31 : vector<8x16x4xf32>
    %33 = arith.addf %25, %32 : vector<8x16x4xf32>
    %34 = vector.extract_strided_slice %26 {offsets = [1, 0, 0], sizes = [8, 16, 4], strides = [1, 1, 1]} : vector<10x16x4xf32> to vector<8x16x4xf32>
    %c1_21 = arith.constant 1 : index
    %c1_22 = arith.constant 1 : index
    %c0_23 = arith.constant 0 : index
    %c0_24 = arith.constant 0 : index
    %35 = vector.load %arg4[%c1_21, %c1_22, %c0_23, %c0_24] : memref<3x3x1x4xf32, #tpu.memory_space<vmem>>, vector<1x1x1x4xf32>
    %36 = vector.shape_cast %35 : vector<1x1x1x4xf32> to vector<1x4xf32>
    %37 = vector.shape_cast %36 : vector<1x4xf32> to vector<1x1x4xf32>
    %38 = vector.broadcast %37 : vector<1x1x4xf32> to vector<8x16x4xf32>
    %39 = arith.mulf %34, %38 : vector<8x16x4xf32>
    %40 = arith.addf %33, %39 : vector<8x16x4xf32>
    %41 = vector.extract_strided_slice %26 {offsets = [2, 0, 0], sizes = [8, 16, 4], strides = [1, 1, 1]} : vector<10x16x4xf32> to vector<8x16x4xf32>
    %c2_25 = arith.constant 2 : index
    %c1_26 = arith.constant 1 : index
    %c0_27 = arith.constant 0 : index
    %c0_28 = arith.constant 0 : index
    %42 = vector.load %arg4[%c2_25, %c1_26, %c0_27, %c0_28] : memref<3x3x1x4xf32, #tpu.memory_space<vmem>>, vector<1x1x1x4xf32>
    %43 = vector.shape_cast %42 : vector<1x1x1x4xf32> to vector<1x4xf32>
    %44 = vector.shape_cast %43 : vector<1x4xf32> to vector<1x1x4xf32>
    %45 = vector.broadcast %44 : vector<1x1x4xf32> to vector<8x16x4xf32>
    %46 = arith.mulf %41, %45 : vector<8x16x4xf32>
    %47 = arith.addf %40, %46 : vector<8x16x4xf32>
    %48 = vector.extract_strided_slice %4 {offsets = [0, 2, 0], sizes = [10, 16, 4], strides = [1, 1, 1]} : vector<10x18x4xf32> to vector<10x16x4xf32>
    %49 = vector.extract_strided_slice %48 {offsets = [0, 0, 0], sizes = [8, 16, 4], strides = [1, 1, 1]} : vector<10x16x4xf32> to vector<8x16x4xf32>
    %c0_29 = arith.constant 0 : index
    %c2_30 = arith.constant 2 : index
    %c0_31 = arith.constant 0 : index
    %c0_32 = arith.constant 0 : index
    %50 = vector.load %arg4[%c0_29, %c2_30, %c0_31, %c0_32] : memref<3x3x1x4xf32, #tpu.memory_space<vmem>>, vector<1x1x1x4xf32>
    %51 = vector.shape_cast %50 : vector<1x1x1x4xf32> to vector<1x4xf32>
    %52 = vector.shape_cast %51 : vector<1x4xf32> to vector<1x1x4xf32>
    %53 = vector.broadcast %52 : vector<1x1x4xf32> to vector<8x16x4xf32>
    %54 = arith.mulf %49, %53 : vector<8x16x4xf32>
    %55 = arith.addf %47, %54 : vector<8x16x4xf32>
    %56 = vector.extract_strided_slice %48 {offsets = [1, 0, 0], sizes = [8, 16, 4], strides = [1, 1, 1]} : vector<10x16x4xf32> to vector<8x16x4xf32>
    %c1_33 = arith.constant 1 : index
    %c2_34 = arith.constant 2 : index
    %c0_35 = arith.constant 0 : index
    %c0_36 = arith.constant 0 : index
    %57 = vector.load %arg4[%c1_33, %c2_34, %c0_35, %c0_36] : memref<3x3x1x4xf32, #tpu.memory_space<vmem>>, vector<1x1x1x4xf32>
    %58 = vector.shape_cast %57 : vector<1x1x1x4xf32> to vector<1x4xf32>
    %59 = vector.shape_cast %58 : vector<1x4xf32> to vector<1x1x4xf32>
    %60 = vector.broadcast %59 : vector<1x1x4xf32> to vector<8x16x4xf32>
    %61 = arith.mulf %56, %60 : vector<8x16x4xf32>
    %62 = arith.addf %55, %61 : vector<8x16x4xf32>
    %63 = vector.extract_strided_slice %48 {offsets = [2, 0, 0], sizes = [8, 16, 4], strides = [1, 1, 1]} : vector<10x16x4xf32> to vector<8x16x4xf32>
    %c2_37 = arith.constant 2 : index
    %c2_38 = arith.constant 2 : index
    %c0_39 = arith.constant 0 : index
    %c0_40 = arith.constant 0 : index
    %64 = vector.load %arg4[%c2_37, %c2_38, %c0_39, %c0_40] : memref<3x3x1x4xf32, #tpu.memory_space<vmem>>, vector<1x1x1x4xf32>
    %65 = vector.shape_cast %64 : vector<1x1x1x4xf32> to vector<1x4xf32>
    %66 = vector.shape_cast %65 : vector<1x4xf32> to vector<1x1x4xf32>
    %67 = vector.broadcast %66 : vector<1x1x4xf32> to vector<8x16x4xf32>
    %68 = arith.mulf %63, %67 : vector<8x16x4xf32>
    %69 = arith.addf %62, %68 : vector<8x16x4xf32>
    %70 = vector.shape_cast %69 : vector<8x16x4xf32> to vector<128x4xf32>
    %c0_41 = arith.constant 0 : index
    %c0_42 = arith.constant 0 : index
    %71 = vector.load %arg5[%c0_41, %c0_42] : memref<4x128xf32, #tpu.memory_space<vmem>>, vector<4x128xf32>
    %cst = arith.constant dense<0.000000e+00> : vector<128x128xf32>
    %72 = tpu.matmul %70, %71, %cst {dimension_numbers = #tpu.dot_dimension_numbers<[1], [0], [0], [1], [0, 0, 1, 1], [], []>} : vector<128x4xf32>, vector<4x128xf32>, vector<128x128xf32> -> vector<128x128xf32>
    %c0_43 = arith.constant 0 : index
    %c0_44 = arith.constant 0 : index
    %73 = vector.load %arg6[%c0_43, %c0_44] : memref<1x128xf32, #tpu.memory_space<vmem>>, vector<1x128xf32>
    %74 = vector.broadcast %73 : vector<1x128xf32> to vector<128x128xf32>
    %75 = arith.addf %72, %74 : vector<128x128xf32>
    %76 = vector.shape_cast %75 : vector<128x128xf32> to vector<1x8x16x128xf32>
    %c0_45 = arith.constant 0 : index
    %c0_46 = arith.constant 0 : index
    %c0_47 = arith.constant 0 : index
    %c0_48 = arith.constant 0 : index
    %77 = vector.load %arg7[%c0_45, %c0_46, %c0_47, %c0_48] : memref<1x8x16x128xf32, #tpu.memory_space<vmem>>, vector<1x8x16x128xf32>
    tpu.vector_store %arg7[%c0_45, %c0_46, %c0_47, %c0_48], %76 {strides = array<i32>} : memref<1x8x16x128xf32, #tpu.memory_space<vmem>>, vector<1x8x16x128xf32>,
    return
  }
  func.func @transform_0(%arg0: i32, %arg1: i32) -> (i32, i32, i32, i32) {
    %c0_i32 = arith.constant 0 : i32
    %c0_i32_0 = arith.constant 0 : i32
    %c0_i32_1 = arith.constant 0 : i32
    return %arg0, %arg1, %c0_i32, %c0_i32_0 : i32, i32, i32, i32
  }
  func.func @transform_1(%arg0: i32, %arg1: i32) -> (i32, i32, i32, i32) {
    %c1_i32 = arith.constant 1 : i32
    %0 = arith.addi %arg1, %c1_i32 : i32
    %c4_i32 = arith.constant 4 : i32
    %1 = arith.muli %0, %c4_i32 : i32
    %c0_i32 = arith.constant 0 : i32
    %c0_i32_0 = arith.constant 0 : i32
    %c0_i32_1 = arith.constant 0 : i32
    return %arg0, %1, %c0_i32, %c0_i32_0 : i32, i32, i32, i32
  }
  func.func @transform_2(%arg0: i32, %arg1: i32) -> (i32, i32, i32, i32) {
    %c0_i32 = arith.constant 0 : i32
    %c0_i32_0 = arith.constant 0 : i32
    %c0_i32_1 = arith.constant 0 : i32
    %c0_i32_2 = arith.constant 0 : i32
    %c0_i32_3 = arith.constant 0 : i32
    return %c0_i32, %c0_i32_0, %c0_i32_1, %c0_i32_2 : i32, i32, i32, i32
  }
  func.func @transform_3(%arg0: i32, %arg1: i32) -> (i32, i32) {
    %c0_i32 = arith.constant 0 : i32
    %c0_i32_0 = arith.constant 0 : i32
    %c0_i32_1 = arith.constant 0 : i32
    return %c0_i32, %c0_i32_0 : i32, i32
  }
  func.func @transform_4(%arg0: i32, %arg1: i32) -> (i32, i32) {
    %c0_i32 = arith.constant 0 : i32
    %c0_i32_0 = arith.constant 0 : i32
    %c0_i32_1 = arith.constant 0 : i32
    return %c0_i32, %c0_i32_0 : i32, i32
  }
  func.func @transform_5(%arg0: i32, %arg1: i32) -> (i32, i32, i32, i32) {
    %c0_i32 = arith.constant 0 : i32
    %c0_i32_0 = arith.constant 0 : i32
    %c0_i32_1 = arith.constant 0 : i32
    return %arg0, %arg1, %c0_i32, %c0_i32_0 : i32, i32, i32, i32
  }
}

</mosaic_0001>

<llo_original>
// kernel: tpu_custom_call.1
$region0: #{tpu_custom_call.1}
  #allocation0 [shape = 'u32[]', space=smem, size = 0x4, offset = 0x4, fixed_abs, tag = 'smem constant byte address 0x4 - core index']
  #allocation1 [shape = 'u32[144,128]{1,0:T(1,128)}', space=vmem, size = 0x12000, scoped, tag = 'internal scratch']
  %s0 = inlined_call_operand.vmem [shape: f32[2,18,18,4], index: 0, kind: input, shape index: {}]
  %s1 = inlined_call_operand.vmem [shape: f32[2,18,18,4], index: 1, kind: input, shape index: {}]
  %s2 = inlined_call_operand.vmem [shape: f32[3,3,1,4], index: 2, kind: input, shape index: {}]
  %s3 = inlined_call_operand.vmem [shape: f32[4,128], index: 3, kind: input, shape index: {}]
  %s4 = inlined_call_operand.vmem [shape: f32[1,128], index: 4, kind: input, shape index: {}]
  %s5 = inlined_call_operand.hbm [shape: f32[2,16,16,128], index: 5, kind: output, shape index: {}]
  %s6 = sld [smem:[#allocation0]]
  $region53: #{tpu_custom_call.1} parent=0
    _
  %s8 = ssub.s32 1, %s6
  %s9 = scalar_select 0, %s8, %s6
  $region1: #{tpu_custom_call.1} parent=0
    #allocation2 [shape = 'u8[131072]{0}', space=vmem, size = 0x20000, scoped, tag = 'output window, operand 0']
    #allocation3 [shape = 's32[2]{0}', space=sflag, size = 0x8, scoped, tag = 'scoped memory for tpu_custom_call.1']
    %10 = vsyncpa [#allocation3], 0
    %s11 = scalar_lea.sflag [#allocation3], 1
    %12 = vsyncpa %s11, 0
    loop: start=0, step=1, limit=6
    $region2: #{tpu_custom_call.1} parent=1 // loop_pre_header
      _
    $region3: #{tpu_custom_call.1} parent=1 // loop_header
      %s14 = sphi 0, %s18
      %p15 = scmp.ge.s32.totalorder %s14, 6
      %s21 = sphi 0, %s33
      %s22 = sphi 0, %s29
      %s23 = sphi 0, %s21
      %s24 = sphi 0, %s22
      %s25 = sphi 0, %s23
      %s26 = sphi 0, %s24
      %s38 = sphi 0, %s40
      %s41 = sphi 0, %s38
      %s42 = sphi 0, %s41
      %s58 = sphi 0, %s42
      %s70 = sphi 0, %s72
      %s73 = sphi 0, %s70
      %s74 = sphi 0, %s73
      %s90 = sphi 0, %s74
      %s94 = sphi 0, %s94
      %s96 = sphi 0, %s94
      %s97 = sphi 0, %s96
      %s111 = sphi 0, %s97
      %s115 = sphi 0, %s115
      %s117 = sphi 0, %s115
      %s118 = sphi 0, %s117
      %s132 = sphi 0, %s118
      %s136 = sphi 0, %s136
      %s138 = sphi 0, %s136
      %s139 = sphi 0, %s138
      %s153 = sphi 0, %s139
      %s161 = sphi 0, %s163
      %s164 = sphi 0, %s161
      %s165 = sphi 0, %s164
      %s181 = sphi 0, %s165
    $region4: #{tpu_custom_call.1} parent=1 // loop_header_branch
      %17 = sbr.rel (%p15) target = $region8
    $region5: #{tpu_custom_call.1} parent=1 // loop_body
      %s19 = ssub.s32 %s14, 1
      %s20 = ssub.s32 %s14, 2
      %s27 = sadd.s32 1, %s22
      %p28 = scmp.ge.s32.totalorder %s27, 2
      %s29 = scalar_select %p28, 0, %s27
      %s30 = sadd.s32 1, %s21
      %s31 = scalar_select %p28, %s30, %s21
      %p32 = scmp.ge.s32.totalorder %s31, 2
      %s33 = scalar_select %p32, 0, %s31
      %s34 = ssub.s32 %s21, %s33
      %s35 = ssub.s32 %s22, %s29
      %s36 = sor.u32 %s34, %s35
      %p37 = scmp.eq.s32.totalorder %s36, 0
      %s39 = sadd.s32 %s38, 1
      %s40 = scalar_select %p37, %s38, %s39
      %p43 = pneg %p37
      %p44 = scmp.eq.s32.totalorder %s14, 3
      %p45 = por %p43, %p44
      %p46 = scmp.ne.s32.totalorder %s38, %s41
      %p47 = scmp.eq.s32.totalorder %s14, 0
      %p48 = por %p46, %p47
      %p49 = scmp.ne.s32.totalorder %s38, %s41
      %p50 = scmp.eq.s32.totalorder %s19, 3
      %p51 = por %p49, %p50
      %p52 = scmp.ne.s32.totalorder %s41, %s42
      %p53 = scmp.eq.s32.totalorder %s19, 0
      %p54 = por %p52, %p53
      %p55 = scmp.ne.s32.totalorder %s41, %s42
      %p56 = scmp.eq.s32.totalorder %s20, 3
      %p57 = por %p55, %p56
      %p59 = scmp.ne.s32.totalorder %s42, %s58
      %p60 = scmp.eq.s32.totalorder %s20, 0
      %p61 = por %p59, %p60
      %s62 = sadd.s32 %s22, 1
      %s63 = smul.u32 %s62, 4
      %s64 = sadd.s32 %s29, 1
      %s65 = smul.u32 %s64, 4
      %s66 = ssub.s32 %s21, %s33
      %s67 = ssub.s32 %s63, %s65
      %s68 = sor.u32 %s66, %s67
      %p69 = scmp.eq.s32.totalorder %s68, 0
      %s71 = sadd.s32 %s70, 1
      %s72 = scalar_select %p69, %s70, %s71
      %p75 = pneg %p69
      %p76 = scmp.eq.s32.totalorder %s14, 3
      %p77 = por %p75, %p76
      %p78 = scmp.ne.s32.totalorder %s70, %s73
      %p79 = scmp.eq.s32.totalorder %s14, 0
      %p80 = por %p78, %p79
      %p81 = scmp.ne.s32.totalorder %s70, %s73
      %p82 = scmp.eq.s32.totalorder %s19, 3
      %p83 = por %p81, %p82
      %p84 = scmp.ne.s32.totalorder %s73, %s74
      %p85 = scmp.eq.s32.totalorder %s19, 0
      %p86 = por %p84, %p85
      %p87 = scmp.ne.s32.totalorder %s73, %s74
      %p88 = scmp.eq.s32.totalorder %s20, 3
      %p89 = por %p87, %p88
      %p91 = scmp.ne.s32.totalorder %s74, %s90
      %p92 = scmp.eq.s32.totalorder %s20, 0
      %p93 = por %p91, %p92
      %s95 = sadd.s32 %s94, 1
      %p98 = scmp.eq.s32.totalorder %s14, 3
      %p99 = scmp.ne.s32.totalorder %s94, %s96
      %p100 = scmp.eq.s32.totalorder %s14, 0
      %p101 = por %p99, %p100
      %p102 = scmp.ne.s32.totalorder %s94, %s96
      %p103 = scmp.eq.s32.totalorder %s19, 3
      %p104 = por %p102, %p103
      %p105 = scmp.ne.s32.totalorder %s96, %s97
      %p106 = scmp.eq.s32.totalorder %s19, 0
      %p107 = por %p105, %p106
      %p108 = scmp.ne.s32.totalorder %s96, %s97
      %p109 = scmp.eq.s32.totalorder %s20, 3
      %p110 = por %p108, %p109
      %p112 = scmp.ne.s32.totalorder %s97, %s111
      %p113 = scmp.eq.s32.totalorder %s20, 0
      %p114 = por %p112, %p113
      %s116 = sadd.s32 %s115, 1
      %p119 = scmp.eq.s32.totalorder %s14, 3
      %p120 = scmp.ne.s32.totalorder %s115, %s117
      %p121 = scmp.eq.s32.totalorder %s14, 0
      %p122 = por %p120, %p121
      %p123 = scmp.ne.s32.totalorder %s115, %s117
      %p124 = scmp.eq.s32.totalorder %s19, 3
      %p125 = por %p123, %p124
      %p126 = scmp.ne.s32.totalorder %s117, %s118
      %p127 = scmp.eq.s32.totalorder %s19, 0
      %p128 = por %p126, %p127
      %p129 = scmp.ne.s32.totalorder %s117, %s118
      %p130 = scmp.eq.s32.totalorder %s20, 3
      %p131 = por %p129, %p130
      %p133 = scmp.ne.s32.totalorder %s118, %s132
      %p134 = scmp.eq.s32.totalorder %s20, 0
      %p135 = por %p133, %p134
      %s137 = sadd.s32 %s136, 1
      %p140 = scmp.eq.s32.totalorder %s14, 3
      %p141 = scmp.ne.s32.totalorder %s136, %s138
      %p142 = scmp.eq.s32.totalorder %s14, 0
      %p143 = por %p141, %p142
      %p144 = scmp.ne.s32.totalorder %s136, %s138
      %p145 = scmp.eq.s32.totalorder %s19, 3
      %p146 = por %p144, %p145
      %p147 = scmp.ne.s32.totalorder %s138, %s139
      %p148 = scmp.eq.s32.totalorder %s19, 0
      %p149 = por %p147, %p148
      %p150 = scmp.ne.s32.totalorder %s138, %s139
      %p151 = scmp.eq.s32.totalorder %s20, 3
      %p152 = por %p150, %p151
      %p154 = scmp.ne.s32.totalorder %s139, %s153
      %p155 = scmp.eq.s32.totalorder %s20, 0
      %p156 = por %p154, %p155
      %s157 = ssub.s32 %s21, %s33
      %s158 = ssub.s32 %s22, %s29
      %s159 = sor.u32 %s157, %s158
      %p160 = scmp.eq.s32.totalorder %s159, 0
      %s162 = sadd.s32 %s161, 1
      %s163 = scalar_select %p160, %s161, %s162
      %p166 = pneg %p160
      %p167 = scmp.eq.s32.totalorder %s14, 3
      %p168 = por %p166, %p167
      %p169 = scmp.ne.s32.totalorder %s161, %s164
      %p170 = scmp.eq.s32.totalorder %s14, 0
      %p171 = por %p169, %p170
      %p172 = scmp.ne.s32.totalorder %s161, %s164
      %p173 = scmp.eq.s32.totalorder %s19, 3
      %p174 = por %p172, %p173
      %p175 = scmp.ne.s32.totalorder %s164, %s165
      %p176 = scmp.eq.s32.totalorder %s19, 0
      %p177 = por %p175, %p176
      %p178 = scmp.ne.s32.totalorder %s164, %s165
      %p179 = scmp.eq.s32.totalorder %s20, 3
      %p180 = por %p178, %p179
      %p182 = scmp.ne.s32.totalorder %s165, %s181
      %p183 = scmp.eq.s32.totalorder %s20, 0
      %p184 = por %p182, %p183
      %p185 = scmp.le.s32.totalorder 1, %s14
      %p186 = scmp.lt.s32.totalorder %s14, 5
      %p187 = pnand %p185, %p186
      %p188 = pneg %p187
      // Predicated region
      $region9: #{tpu_custom_call.1} parent=5 // pred_check
        _
      $region10: #{tpu_custom_call.1} parent=5 // pred_check_branch
        %190 = sbr.rel (%p187) target = $region12
      $region11: #{tpu_custom_call.1} parent=5 // pred_region
        %s191 = ssub.s32 %s14, 1
        // Predicated region
        $region13: #{tpu_custom_call.1} parent=11 // pred_check
          %p192 = pneg %p107
        $region14: #{tpu_custom_call.1} parent=11 // pred_check_branch
          %194 = sbr.rel (%p192) target = $region16
        $region15: #{tpu_custom_call.1} parent=11 // pred_region
          _
        $region16: #{tpu_custom_call.1} parent=11 // pred_fallthru
          _
        // Predicated region
        $region17: #{tpu_custom_call.1} parent=11 // pred_check
          %p195 = pneg %p128
        $region18: #{tpu_custom_call.1} parent=11 // pred_check_branch
          %197 = sbr.rel (%p195) target = $region20
        $region19: #{tpu_custom_call.1} parent=11 // pred_region
          _
        $region20: #{tpu_custom_call.1} parent=11 // pred_fallthru
          _
        // Predicated region
        $region21: #{tpu_custom_call.1} parent=11 // pred_check
          %p198 = pneg %p149
        $region22: #{tpu_custom_call.1} parent=11 // pred_check_branch
          %200 = sbr.rel (%p198) target = $region24
        $region23: #{tpu_custom_call.1} parent=11 // pred_region
          _
        $region24: #{tpu_custom_call.1} parent=11 // pred_fallthru
          _
      $region12: #{tpu_custom_call.1} parent=5 // pred_fallthru
        _
      %p201 = scmp.lt.s32.totalorder %s14, 4
      // Predicated region
      $region25: #{tpu_custom_call.1} parent=5 // pred_check
        %p202 = pneg %p201
      $region26: #{tpu_custom_call.1} parent=5 // pred_check_branch
        %204 = sbr.rel (%p202) target = $region28
      $region27: #{tpu_custom_call.1} parent=5 // pred_region
        // Predicated region
        $region29: #{tpu_custom_call.1} parent=27 // pred_check
          %p205 = pneg %p48
        $region30: #{tpu_custom_call.1} parent=27 // pred_check_branch
          %207 = sbr.rel (%p205) target = $region32
        $region31: #{tpu_custom_call.1} parent=27 // pred_region
          %s208 = smul.u32 8, %s22
          %s209 = ssub.s32 18, %s208
          %p210 = scmp.lt.s32.totalorder %s209, 8
          %s211 = scalar_select %p210, %s209, 8
          %s212 = smul.u32 128, %s211
          %s213 = smul.u32 %s212, 3
          %p214 = scmp.lt.s32.totalorder %s21, 1
          %s215 = scalar_select %p214, %s21, 1
          %p216 = scmp.lt.s32.totalorder %s208, 17
          %s217 = scalar_select %p216, %s208, 17
          %s218 = smul.addr %s217, 3
          %s219 = smul.addr %s215, 54
          %s220 = sadd.s32 %s218, %s219
          %s221 = smul.addr %s220, 8
          %s222 = scalar_lea.vmem %s0, %s221
          %s223 = smul.u32 8, %s22
          %s224 = ssub.s32 18, %s223
          %p225 = scmp.lt.s32.totalorder %s224, 8
          %s226 = scalar_select %p225, %s224, 8
          %s227 = smul.u32 128, %s226
          %s228 = smul.u32 %s227, 3
        $region32: #{tpu_custom_call.1} parent=27 // pred_fallthru
          _
        // Predicated region
        $region33: #{tpu_custom_call.1} parent=27 // pred_check
          %p229 = pneg %p80
        $region34: #{tpu_custom_call.1} parent=27 // pred_check_branch
          %231 = sbr.rel (%p229) target = $region36
        $region35: #{tpu_custom_call.1} parent=27 // pred_region
          %s232 = sadd.s32 %s22, 1
          %s233 = smul.u32 %s232, 4
          %s234 = smul.u32 2, %s233
          %p235 = scmp.lt.s32.totalorder %s21, 1
          %s236 = scalar_select %p235, %s21, 1
          %p237 = scmp.lt.s32.totalorder %s234, 17
          %s238 = scalar_select %p237, %s234, 17
          %s239 = smul.addr %s238, 3
          %s240 = smul.addr %s236, 54
          %s241 = sadd.s32 %s239, %s240
          %s242 = smul.addr %s241, 8
          %s243 = scalar_lea.vmem %s1, %s242
          %s244 = sadd.s32 %s22, 1
          %s245 = smul.u32 %s244, 4
          %s246 = smul.u32 2, %s245
        $region36: #{tpu_custom_call.1} parent=27 // pred_fallthru
          _
      $region28: #{tpu_custom_call.1} parent=5 // pred_fallthru
        _
      %p247 = scmp.le.s32.totalorder 1, %s14
      %p248 = scmp.lt.s32.totalorder %s14, 5
      %p249 = pnand %p247, %p248
      %p250 = pneg %p249
      // Predicated region
      $region37: #{tpu_custom_call.1} parent=5 // pred_check
        _
      $region38: #{tpu_custom_call.1} parent=5 // pred_check_branch
        %252 = sbr.rel (%p249) target = $region40
      $region39: #{tpu_custom_call.1} parent=5 // pred_region
        %s253 = ssub.s32 %s14, 1
        %s254 = smul.u32 8, %s24
        %s255 = ssub.s32 18, %s254
        %p256 = scmp.lt.s32.totalorder %s255, 8
        %s257 = scalar_select %p256, %s255, 8
        %s258 = smul.u32 128, %s257
        %s259 = smul.u32 %s258, 3
        %p260 = scmp.lt.s32.totalorder %s23, 1
        %s261 = scalar_select %p260, %s23, 1
        %p262 = scmp.lt.s32.totalorder %s254, 17
        %s263 = scalar_select %p262, %s254, 17
        %s264 = smul.addr %s263, 3
        %s265 = smul.addr %s261, 54
        %s266 = sadd.s32 %s264, %s265
        %s267 = smul.addr %s266, 8
        %s268 = scalar_lea.vmem %s0, %s267
        %p269 = pneg %p54
        %p270 = pneg %p51
        %s271 = sadd.s32 %s24, 1
        %s272 = smul.u32 %s271, 4
        %s273 = smul.u32 2, %s272
        %p274 = scmp.lt.s32.totalorder %s23, 1
        %s275 = scalar_select %p274, %s23, 1
        %p276 = scmp.lt.s32.totalorder %s273, 17
        %s277 = scalar_select %p276, %s273, 17
        %s278 = smul.addr %s277, 3
        %s279 = smul.addr %s275, 54
        %s280 = sadd.s32 %s278, %s279
        %s281 = smul.addr %s280, 8
        %s282 = scalar_lea.vmem %s1, %s281
        %p283 = pneg %p86
        %p284 = pneg %p83
        %p285 = pneg %p107
        %p286 = pneg %p104
        %p287 = pneg %p128
        %p288 = pneg %p125
        %p289 = pneg %p149
        %p290 = pneg %p146
        %p291 = pneg %p177
        %p292 = pneg %p174
        %s293 = sand.u32 %s164, 1
        %s294 = scalar_lea.sflag [#allocation3], %s293
        %s295 = sand.u32 %s164, 1
        %s296 = smul.addr %s295, 128
        %s297 = scalar_lea.vmem [#allocation2], %s296
        %s298 = smul.u32 8, %s24
        %s299 = ssub.s32 18, %s298
        %p300 = scmp.lt.s32.totalorder %s299, 8
        %s301 = scalar_select %p300, %s299, 8
        %s302 = smul.u32 128, %s301
        %s303 = smul.u32 %s302, 3
        %p304 = scmp.lt.s32.totalorder %s23, 1
        %s305 = scalar_select %p304, %s23, 1
        %p306 = scmp.lt.s32.totalorder %s298, 17
        %s307 = scalar_select %p306, %s298, 17
        %s308 = smul.addr %s307, 3
        %s309 = smul.addr %s305, 54
        %s310 = sadd.s32 %s308, %s309
        %s311 = smul.addr %s310, 8
        %s312 = scalar_lea.vmem %s0, %s311
        %s313 = smul.u32 8, %s24
        %s314 = ssub.s32 18, %s313
        %p315 = scmp.lt.s32.totalorder %s314, 8
        %s316 = scalar_select %p315, %s314, 8
        %s317 = smul.u32 128, %s316
        %s318 = smul.u32 %s317, 3
        %s319 = sadd.s32 %s24, 1
        %s320 = smul.u32 %s319, 4
        %s321 = smul.u32 2, %s320
        %p322 = scmp.lt.s32.totalorder %s23, 1
        %s323 = scalar_select %p322, %s23, 1
        %p324 = scmp.lt.s32.totalorder %s321, 17
        %s325 = scalar_select %p324, %s321, 17
        %s326 = smul.addr %s325, 3
        %s327 = smul.addr %s323, 54
        %s328 = sadd.s32 %s326, %s327
        %s329 = smul.addr %s328, 8
        %s330 = scalar_lea.vmem %s1, %s329
        %s331 = sadd.s32 %s24, 1
        %s332 = smul.u32 %s331, 4
        %s333 = smul.u32 2, %s332
        %s334 = smul.u32 8, %s24
        %v335 = vld [vmem:[%s312] sm:$0xff]
        %v336 = vld [vmem:[%s312 + $0x8] sm:$0xff]
        %v337 = vld [vmem:[%s312 + $0x10] sm:$0x3]
        %v338 = vld [vmem:[%s312 + $0x18] sm:$0xff]
        %v339 = vld [vmem:[%s312 + $0x20] sm:$0xff]
        %v340 = vld [vmem:[%s312 + $0x28] sm:$0x3]
        %v341 = vld [vmem:[%s312 + $0x30] sm:$0xff]
        %v342 = vld [vmem:[%s312 + $0x38] sm:$0xff]
        %v343 = vld [vmem:[%s312 + $0x40] sm:$0x3]
        %v344 = vld [vmem:[%s312 + $0x48] sm:$0xff]
        %v345 = vld [vmem:[%s312 + $0x50] sm:$0xff]
        %v346 = vld [vmem:[%s312 + $0x58] sm:$0x3]
        %v347 = vld [vmem:[%s312 + $0x60] sm:$0xff]
        %v348 = vld [vmem:[%s312 + $0x68] sm:$0xff]
        %v349 = vld [vmem:[%s312 + $0x70] sm:$0x3]
        %v350 = vld [vmem:[%s312 + $0x78] sm:$0xff]
        %v351 = vld [vmem:[%s312 + $0x80] sm:$0xff]
        %v352 = vld [vmem:[%s312 + $0x88] sm:$0x3]
        %v353 = vld [vmem:[%s312 + $0x90] sm:$0xff]
        %v354 = vld [vmem:[%s312 + $0x98] sm:$0xff]
        %v355 = vld [vmem:[%s312 + $0xa0] sm:$0x3]
        %v356 = vld [vmem:[%s312 + $0xa8] sm:$0xff]
        %v357 = vld [vmem:[%s312 + $0xb0] sm:$0xff]
        %v358 = vld [vmem:[%s312 + $0xb8] sm:$0x3]
        %v359 = vld [vmem:[%s330] sm:$0xff]
        %v360 = vld [vmem:[%s330 + $0x8] sm:$0xff]
        %v361 = vld [vmem:[%s330 + $0x10] sm:$0x3]
        %v362 = vld [vmem:[%s330 + $0x18] sm:$0xff]
        %v363 = vld [vmem:[%s330 + $0x20] sm:$0xff]
        %v364 = vld [vmem:[%s330 + $0x28] sm:$0x3]
        %v365 = vld [vmem:[%s2] sm:$0x1]
        %v367 = vlaneseq
        %v368 = vshrl.u32 %v367, 7
        %v369 = vsub.s32 0, %v368
        %v370 = vrot.slane %v365, %v369
        %v372 = vmul.f32 %v335, %v370
        %v373 = vmul.f32 %v336, %v370
        %v374 = vmul.f32 %v338, %v370
        %v375 = vmul.f32 %v339, %v370
        %v376 = vmul.f32 %v341, %v370
        %v377 = vmul.f32 %v342, %v370
        %v378 = vmul.f32 %v344, %v370
        %v379 = vmul.f32 %v345, %v370
        %v380 = vmul.f32 %v347, %v370
        %v381 = vmul.f32 %v348, %v370
        %v382 = vmul.f32 %v350, %v370
        %v383 = vmul.f32 %v351, %v370
        %v384 = vmul.f32 %v353, %v370
        %v385 = vmul.f32 %v354, %v370
        %v386 = vmul.f32 %v356, %v370
        %v387 = vmul.f32 %v357, %v370
        %s388 = scalar_lea.vmem %s2, 3
        %v389 = vld [vmem:[%s388] sm:$0x1]
        %v391 = vlaneseq
        %v392 = vshrl.u32 %v391, 7
        %v393 = vsub.s32 0, %v392
        %v394 = vrot.slane %v389, %v393
        %v396 = vmul.f32 %v338, %v394
        %v397 = vmul.f32 %v339, %v394
        %v398 = vmul.f32 %v341, %v394
        %v399 = vmul.f32 %v342, %v394
        %v400 = vmul.f32 %v344, %v394
        %v401 = vmul.f32 %v345, %v394
        %v402 = vmul.f32 %v347, %v394
        %v403 = vmul.f32 %v348, %v394
        %v404 = vmul.f32 %v350, %v394
        %v405 = vmul.f32 %v351, %v394
        %v406 = vmul.f32 %v353, %v394
        %v407 = vmul.f32 %v354, %v394
        %v408 = vmul.f32 %v356, %v394
        %v409 = vmul.f32 %v357, %v394
        %v410 = vmul.f32 %v359, %v394
        %v411 = vmul.f32 %v360, %v394
        %v412 = vadd.f32 %v372, %v396
        %v413 = vadd.f32 %v373, %v397
        %v414 = vadd.f32 %v374, %v398
        %v415 = vadd.f32 %v375, %v399
        %v416 = vadd.f32 %v376, %v400
        %v417 = vadd.f32 %v377, %v401
        %v418 = vadd.f32 %v378, %v402
        %v419 = vadd.f32 %v379, %v403
        %v420 = vadd.f32 %v380, %v404
        %v421 = vadd.f32 %v381, %v405
        %v422 = vadd.f32 %v382, %v406
        %v423 = vadd.f32 %v383, %v407
        %v424 = vadd.f32 %v384, %v408
        %v425 = vadd.f32 %v385, %v409
        %v426 = vadd.f32 %v386, %v410
        %v427 = vadd.f32 %v387, %v411
        %s428 = scalar_lea.vmem %s2, 6
        %v429 = vld [vmem:[%s428] sm:$0x1]
        %v431 = vlaneseq
        %v432 = vshrl.u32 %v431, 7
        %v433 = vsub.s32 0, %v432
        %v434 = vrot.slane %v429, %v433
        %v436 = vmul.f32 %v341, %v434
        %v437 = vmul.f32 %v342, %v434
        %v438 = vmul.f32 %v344, %v434
        %v439 = vmul.f32 %v345, %v434
        %v440 = vmul.f32 %v347, %v434
        %v441 = vmul.f32 %v348, %v434
        %v442 = vmul.f32 %v350, %v434
        %v443 = vmul.f32 %v351, %v434
        %v444 = vmul.f32 %v353, %v434
        %v445 = vmul.f32 %v354, %v434
        %v446 = vmul.f32 %v356, %v434
        %v447 = vmul.f32 %v357, %v434
        %v448 = vmul.f32 %v359, %v434
        %v449 = vmul.f32 %v360, %v434
        %v450 = vmul.f32 %v362, %v434
        %v451 = vmul.f32 %v363, %v434
        %v452 = vadd.f32 %v412, %v436
        %v453 = vadd.f32 %v413, %v437
        %v454 = vadd.f32 %v414, %v438
        %v455 = vadd.f32 %v415, %v439
        %v456 = vadd.f32 %v416, %v440
        %v457 = vadd.f32 %v417, %v441
        %v458 = vadd.f32 %v418, %v442
        %v459 = vadd.f32 %v419, %v443
        %v460 = vadd.f32 %v420, %v444
        %v461 = vadd.f32 %v421, %v445
        %v462 = vadd.f32 %v422, %v446
        %v463 = vadd.f32 %v423, %v447
        %v464 = vadd.f32 %v424, %v448
        %v465 = vadd.f32 %v425, %v449
        %v466 = vadd.f32 %v426, %v450
        %v467 = vadd.f32 %v427, %v451
        %s468 = scalar_lea.vmem %s2, 1
        %v469 = vld [vmem:[%s468] sm:$0x1]
        %v471 = vlaneseq
        %v472 = vshrl.u32 %v471, 7
        %v473 = vsub.s32 0, %v472
        %v474 = vrot.slane %v469, %v473
        %v476 = vmul.f32 %v335, %v474
        %v477 = vmul.f32 %v336, %v474
        %v478 = vmul.f32 %v337, %v474
        %v479 = vmul.f32 %v338, %v474
        %v480 = vmul.f32 %v339, %v474
        %v481 = vmul.f32 %v340, %v474
        %v482 = vmul.f32 %v341, %v474
        %v483 = vmul.f32 %v342, %v474
        %v484 = vmul.f32 %v343, %v474
        %v485 = vmul.f32 %v344, %v474
        %v486 = vmul.f32 %v345, %v474
        %v487 = vmul.f32 %v346, %v474
        %v488 = vmul.f32 %v347, %v474
        %v489 = vmul.f32 %v348, %v474
        %v490 = vmul.f32 %v349, %v474
        %v491 = vmul.f32 %v350, %v474
        %v492 = vmul.f32 %v351, %v474
        %v493 = vmul.f32 %v352, %v474
        %v494 = vmul.f32 %v353, %v474
        %v495 = vmul.f32 %v354, %v474
        %v496 = vmul.f32 %v355, %v474
        %v497 = vmul.f32 %v356, %v474
        %v498 = vmul.f32 %v357, %v474
        %v499 = vmul.f32 %v358, %v474
        %vm524 = vcmask 1046528
        %v525 = vrot.slane %v476, 1
        %v526 = vrot.slane %v477, 1
        %v527 = vsel %vm524, %v525, %v526
        %v528 = vrot.slane %v478, 1
        %v529 = vsel %vm524, %v526, %v528
        %v530 = vrot.slane %v479, 1
        %v531 = vrot.slane %v480, 1
        %v532 = vsel %vm524, %v530, %v531
        %v533 = vrot.slane %v481, 1
        %v534 = vsel %vm524, %v531, %v533
        %v535 = vrot.slane %v482, 1
        %v536 = vrot.slane %v483, 1
        %v537 = vsel %vm524, %v535, %v536
        %v538 = vrot.slane %v484, 1
        %v539 = vsel %vm524, %v536, %v538
        %v540 = vrot.slane %v485, 1
        %v541 = vrot.slane %v486, 1
        %v542 = vsel %vm524, %v540, %v541
        %v543 = vrot.slane %v487, 1
        %v544 = vsel %vm524, %v541, %v543
        %v545 = vrot.slane %v488, 1
        %v546 = vrot.slane %v489, 1
        %v547 = vsel %vm524, %v545, %v546
        %v548 = vrot.slane %v490, 1
        %v549 = vsel %vm524, %v546, %v548
        %v550 = vrot.slane %v491, 1
        %v551 = vrot.slane %v492, 1
        %v552 = vsel %vm524, %v550, %v551
        %v553 = vrot.slane %v493, 1
        %v554 = vsel %vm524, %v551, %v553
        %v555 = vrot.slane %v494, 1
        %v556 = vrot.slane %v495, 1
        %v557 = vsel %vm524, %v555, %v556
        %v558 = vrot.slane %v496, 1
        %v559 = vsel %vm524, %v556, %v558
        %v560 = vrot.slane %v497, 1
        %v561 = vrot.slane %v498, 1
        %v562 = vsel %vm524, %v560, %v561
        %v563 = vrot.slane %v499, 1
        %v564 = vsel %vm524, %v561, %v563
        %v581 = vadd.f32 %v452, %v527
        %v582 = vadd.f32 %v453, %v529
        %v583 = vadd.f32 %v454, %v532
        %v584 = vadd.f32 %v455, %v534
        %v585 = vadd.f32 %v456, %v537
        %v586 = vadd.f32 %v457, %v539
        %v587 = vadd.f32 %v458, %v542
        %v588 = vadd.f32 %v459, %v544
        %v589 = vadd.f32 %v460, %v547
        %v590 = vadd.f32 %v461, %v549
        %v591 = vadd.f32 %v462, %v552
        %v592 = vadd.f32 %v463, %v554
        %v593 = vadd.f32 %v464, %v557
        %v594 = vadd.f32 %v465, %v559
        %v595 = vadd.f32 %v466, %v562
        %v596 = vadd.f32 %v467, %v564
        %s597 = scalar_lea.vmem %s2, 4
        %v598 = vld [vmem:[%s597] sm:$0x1]
        %v600 = vlaneseq
        %v601 = vshrl.u32 %v600, 7
        %v602 = vsub.s32 0, %v601
        %v603 = vrot.slane %v598, %v602
        %v605 = vmul.f32 %v338, %v603
        %v606 = vmul.f32 %v339, %v603
        %v607 = vmul.f32 %v340, %v603
        %v608 = vmul.f32 %v341, %v603
        %v609 = vmul.f32 %v342, %v603
        %v610 = vmul.f32 %v343, %v603
        %v611 = vmul.f32 %v344, %v603
        %v612 = vmul.f32 %v345, %v603
        %v613 = vmul.f32 %v346, %v603
        %v614 = vmul.f32 %v347, %v603
        %v615 = vmul.f32 %v348, %v603
        %v616 = vmul.f32 %v349, %v603
        %v617 = vmul.f32 %v350, %v603
        %v618 = vmul.f32 %v351, %v603
        %v619 = vmul.f32 %v352, %v603
        %v620 = vmul.f32 %v353, %v603
        %v621 = vmul.f32 %v354, %v603
        %v622 = vmul.f32 %v355, %v603
        %v623 = vmul.f32 %v356, %v603
        %v624 = vmul.f32 %v357, %v603
        %v625 = vmul.f32 %v358, %v603
        %v626 = vmul.f32 %v359, %v603
        %v627 = vmul.f32 %v360, %v603
        %v628 = vmul.f32 %v361, %v603
        %v653 = vrot.slane %v605, 1
        %v654 = vrot.slane %v606, 1
        %v655 = vsel %vm524, %v653, %v654
        %v656 = vrot.slane %v607, 1
        %v657 = vsel %vm524, %v654, %v656
        %v658 = vrot.slane %v608, 1
        %v659 = vrot.slane %v609, 1
        %v660 = vsel %vm524, %v658, %v659
        %v661 = vrot.slane %v610, 1
        %v662 = vsel %vm524, %v659, %v661
        %v663 = vrot.slane %v611, 1
        %v664 = vrot.slane %v612, 1
        %v665 = vsel %vm524, %v663, %v664
        %v666 = vrot.slane %v613, 1
        %v667 = vsel %vm524, %v664, %v666
        %v668 = vrot.slane %v614, 1
        %v669 = vrot.slane %v615, 1
        %v670 = vsel %vm524, %v668, %v669
        %v671 = vrot.slane %v616, 1
        %v672 = vsel %vm524, %v669, %v671
        %v673 = vrot.slane %v617, 1
        %v674 = vrot.slane %v618, 1
        %v675 = vsel %vm524, %v673, %v674
        %v676 = vrot.slane %v619, 1
        %v677 = vsel %vm524, %v674, %v676
        %v678 = vrot.slane %v620, 1
        %v679 = vrot.slane %v621, 1
        %v680 = vsel %vm524, %v678, %v679
        %v681 = vrot.slane %v622, 1
        %v682 = vsel %vm524, %v679, %v681
        %v683 = vrot.slane %v623, 1
        %v684 = vrot.slane %v624, 1
        %v685 = vsel %vm524, %v683, %v684
        %v686 = vrot.slane %v625, 1
        %v687 = vsel %vm524, %v684, %v686
        %v688 = vrot.slane %v626, 1
        %v689 = vrot.slane %v627, 1
        %v690 = vsel %vm524, %v688, %v689
        %v691 = vrot.slane %v628, 1
        %v692 = vsel %vm524, %v689, %v691
        %v709 = vadd.f32 %v581, %v655
        %v710 = vadd.f32 %v582, %v657
        %v711 = vadd.f32 %v583, %v660
        %v712 = vadd.f32 %v584, %v662
        %v713 = vadd.f32 %v585, %v665
        %v714 = vadd.f32 %v586, %v667
        %v715 = vadd.f32 %v587, %v670
        %v716 = vadd.f32 %v588, %v672
        %v717 = vadd.f32 %v589, %v675
        %v718 = vadd.f32 %v590, %v677
        %v719 = vadd.f32 %v591, %v680
        %v720 = vadd.f32 %v592, %v682
        %v721 = vadd.f32 %v593, %v685
        %v722 = vadd.f32 %v594, %v687
        %v723 = vadd.f32 %v595, %v690
        %v724 = vadd.f32 %v596, %v692
        %s725 = scalar_lea.vmem %s2, 7
        %v726 = vld [vmem:[%s725] sm:$0x1]
        %v728 = vlaneseq
        %v729 = vshrl.u32 %v728, 7
        %v730 = vsub.s32 0, %v729
        %v731 = vrot.slane %v726, %v730
        %v733 = vmul.f32 %v341, %v731
        %v734 = vmul.f32 %v342, %v731
        %v735 = vmul.f32 %v343, %v731
        %v736 = vmul.f32 %v344, %v731
        %v737 = vmul.f32 %v345, %v731
        %v738 = vmul.f32 %v346, %v731
        %v739 = vmul.f32 %v347, %v731
        %v740 = vmul.f32 %v348, %v731
        %v741 = vmul.f32 %v349, %v731
        %v742 = vmul.f32 %v350, %v731
        %v743 = vmul.f32 %v351, %v731
        %v744 = vmul.f32 %v352, %v731
        %v745 = vmul.f32 %v353, %v731
        %v746 = vmul.f32 %v354, %v731
        %v747 = vmul.f32 %v355, %v731
        %v748 = vmul.f32 %v356, %v731
        %v749 = vmul.f32 %v357, %v731
        %v750 = vmul.f32 %v358, %v731
        %v751 = vmul.f32 %v359, %v731
        %v752 = vmul.f32 %v360, %v731
        %v753 = vmul.f32 %v361, %v731
        %v754 = vmul.f32 %v362, %v731
        %v755 = vmul.f32 %v363, %v731
        %v756 = vmul.f32 %v364, %v731
        %v781 = vrot.slane %v733, 1
        %v782 = vrot.slane %v734, 1
        %v783 = vsel %vm524, %v781, %v782
        %v784 = vrot.slane %v735, 1
        %v785 = vsel %vm524, %v782, %v784
        %v786 = vrot.slane %v736, 1
        %v787 = vrot.slane %v737, 1
        %v788 = vsel %vm524, %v786, %v787
        %v789 = vrot.slane %v738, 1
        %v790 = vsel %vm524, %v787, %v789
        %v791 = vrot.slane %v739, 1
        %v792 = vrot.slane %v740, 1
        %v793 = vsel %vm524, %v791, %v792
        %v794 = vrot.slane %v741, 1
        %v795 = vsel %vm524, %v792, %v794
        %v796 = vrot.slane %v742, 1
        %v797 = vrot.slane %v743, 1
        %v798 = vsel %vm524, %v796, %v797
        %v799 = vrot.slane %v744, 1
        %v800 = vsel %vm524, %v797, %v799
        %v801 = vrot.slane %v745, 1
        %v802 = vrot.slane %v746, 1
        %v803 = vsel %vm524, %v801, %v802
        %v804 = vrot.slane %v747, 1
        %v805 = vsel %vm524, %v802, %v804
        %v806 = vrot.slane %v748, 1
        %v807 = vrot.slane %v749, 1
        %v808 = vsel %vm524, %v806, %v807
        %v809 = vrot.slane %v750, 1
        %v810 = vsel %vm524, %v807, %v809
        %v811 = vrot.slane %v751, 1
        %v812 = vrot.slane %v752, 1
        %v813 = vsel %vm524, %v811, %v812
        %v814 = vrot.slane %v753, 1
        %v815 = vsel %vm524, %v812, %v814
        %v816 = vrot.slane %v754, 1
        %v817 = vrot.slane %v755, 1
        %v818 = vsel %vm524, %v816, %v817
        %v819 = vrot.slane %v756, 1
        %v820 = vsel %vm524, %v817, %v819
        %v837 = vadd.f32 %v709, %v783
        %v838 = vadd.f32 %v710, %v785
        %v839 = vadd.f32 %v711, %v788
        %v840 = vadd.f32 %v712, %v790
        %v841 = vadd.f32 %v713, %v793
        %v842 = vadd.f32 %v714, %v795
        %v843 = vadd.f32 %v715, %v798
        %v844 = vadd.f32 %v716, %v800
        %v845 = vadd.f32 %v717, %v803
        %v846 = vadd.f32 %v718, %v805
        %v847 = vadd.f32 %v719, %v808
        %v848 = vadd.f32 %v720, %v810
        %v849 = vadd.f32 %v721, %v813
        %v850 = vadd.f32 %v722, %v815
        %v851 = vadd.f32 %v723, %v818
        %v852 = vadd.f32 %v724, %v820
        %s853 = scalar_lea.vmem %s2, 2
        %v854 = vld [vmem:[%s853] sm:$0x1]
        %v856 = vlaneseq
        %v857 = vshrl.u32 %v856, 7
        %v858 = vsub.s32 0, %v857
        %v859 = vrot.slane %v854, %v858
        %v861 = vmul.f32 %v335, %v859
        %v862 = vmul.f32 %v336, %v859
        %v863 = vmul.f32 %v337, %v859
        %v864 = vmul.f32 %v338, %v859
        %v865 = vmul.f32 %v339, %v859
        %v866 = vmul.f32 %v340, %v859
        %v867 = vmul.f32 %v341, %v859
        %v868 = vmul.f32 %v342, %v859
        %v869 = vmul.f32 %v343, %v859
        %v870 = vmul.f32 %v344, %v859
        %v871 = vmul.f32 %v345, %v859
        %v872 = vmul.f32 %v346, %v859
        %v873 = vmul.f32 %v347, %v859
        %v874 = vmul.f32 %v348, %v859
        %v875 = vmul.f32 %v349, %v859
        %v876 = vmul.f32 %v350, %v859
        %v877 = vmul.f32 %v351, %v859
        %v878 = vmul.f32 %v352, %v859
        %v879 = vmul.f32 %v353, %v859
        %v880 = vmul.f32 %v354, %v859
        %v881 = vmul.f32 %v355, %v859
        %v882 = vmul.f32 %v356, %v859
        %v883 = vmul.f32 %v357, %v859
        %v884 = vmul.f32 %v358, %v859
        %vm909 = vcmask 1045504
        %v910 = vrot.slane %v861, 2
        %v911 = vrot.slane %v862, 2
        %v912 = vsel %vm909, %v910, %v911
        %v913 = vrot.slane %v863, 2
        %v914 = vsel %vm909, %v911, %v913
        %v915 = vrot.slane %v864, 2
        %v916 = vrot.slane %v865, 2
        %v917 = vsel %vm909, %v915, %v916
        %v918 = vrot.slane %v866, 2
        %v919 = vsel %vm909, %v916, %v918
        %v920 = vrot.slane %v867, 2
        %v921 = vrot.slane %v868, 2
        %v922 = vsel %vm909, %v920, %v921
        %v923 = vrot.slane %v869, 2
        %v924 = vsel %vm909, %v921, %v923
        %v925 = vrot.slane %v870, 2
        %v926 = vrot.slane %v871, 2
        %v927 = vsel %vm909, %v925, %v926
        %v928 = vrot.slane %v872, 2
        %v929 = vsel %vm909, %v926, %v928
        %v930 = vrot.slane %v873, 2
        %v931 = vrot.slane %v874, 2
        %v932 = vsel %vm909, %v930, %v931
        %v933 = vrot.slane %v875, 2
        %v934 = vsel %vm909, %v931, %v933
        %v935 = vrot.slane %v876, 2
        %v936 = vrot.slane %v877, 2
        %v937 = vsel %vm909, %v935, %v936
        %v938 = vrot.slane %v878, 2
        %v939 = vsel %vm909, %v936, %v938
        %v940 = vrot.slane %v879, 2
        %v941 = vrot.slane %v880, 2
        %v942 = vsel %vm909, %v940, %v941
        %v943 = vrot.slane %v881, 2
        %v944 = vsel %vm909, %v941, %v943
        %v945 = vrot.slane %v882, 2
        %v946 = vrot.slane %v883, 2
        %v947 = vsel %vm909, %v945, %v946
        %v948 = vrot.slane %v884, 2
        %v949 = vsel %vm909, %v946, %v948
        %v966 = vadd.f32 %v837, %v912
        %v967 = vadd.f32 %v838, %v914
        %v968 = vadd.f32 %v839, %v917
        %v969 = vadd.f32 %v840, %v919
        %v970 = vadd.f32 %v841, %v922
        %v971 = vadd.f32 %v842, %v924
        %v972 = vadd.f32 %v843, %v927
        %v973 = vadd.f32 %v844, %v929
        %v974 = vadd.f32 %v845, %v932
        %v975 = vadd.f32 %v846, %v934
        %v976 = vadd.f32 %v847, %v937
        %v977 = vadd.f32 %v848, %v939
        %v978 = vadd.f32 %v849, %v942
        %v979 = vadd.f32 %v850, %v944
        %v980 = vadd.f32 %v851, %v947
        %v981 = vadd.f32 %v852, %v949
        %s982 = scalar_lea.vmem %s2, 5
        %v983 = vld [vmem:[%s982] sm:$0x1]
        %v985 = vlaneseq
        %v986 = vshrl.u32 %v985, 7
        %v987 = vsub.s32 0, %v986
        %v988 = vrot.slane %v983, %v987
        %v990 = vmul.f32 %v338, %v988
        %v991 = vmul.f32 %v339, %v988
        %v992 = vmul.f32 %v340, %v988
        %v993 = vmul.f32 %v341, %v988
        %v994 = vmul.f32 %v342, %v988
        %v995 = vmul.f32 %v343, %v988
        %v996 = vmul.f32 %v344, %v988
        %v997 = vmul.f32 %v345, %v988
        %v998 = vmul.f32 %v346, %v988
        %v999 = vmul.f32 %v347, %v988
        %v1000 = vmul.f32 %v348, %v988
        %v1001 = vmul.f32 %v349, %v988
        %v1002 = vmul.f32 %v350, %v988
        %v1003 = vmul.f32 %v351, %v988
        %v1004 = vmul.f32 %v352, %v988
        %v1005 = vmul.f32 %v353, %v988
        %v1006 = vmul.f32 %v354, %v988
        %v1007 = vmul.f32 %v355, %v988
        %v1008 = vmul.f32 %v356, %v988
        %v1009 = vmul.f32 %v357, %v988
        %v1010 = vmul.f32 %v358, %v988
        %v1011 = vmul.f32 %v359, %v988
        %v1012 = vmul.f32 %v360, %v988
        %v1013 = vmul.f32 %v361, %v988
        %v1038 = vrot.slane %v990, 2
        %v1039 = vrot.slane %v991, 2
        %v1040 = vsel %vm909, %v1038, %v1039
        %v1041 = vrot.slane %v992, 2
        %v1042 = vsel %vm909, %v1039, %v1041
        %v1043 = vrot.slane %v993, 2
        %v1044 = vrot.slane %v994, 2
        %v1045 = vsel %vm909, %v1043, %v1044
        %v1046 = vrot.slane %v995, 2
        %v1047 = vsel %vm909, %v1044, %v1046
        %v1048 = vrot.slane %v996, 2
        %v1049 = vrot.slane %v997, 2
        %v1050 = vsel %vm909, %v1048, %v1049
        %v1051 = vrot.slane %v998, 2
        %v1052 = vsel %vm909, %v1049, %v1051
        %v1053 = vrot.slane %v999, 2
        %v1054 = vrot.slane %v1000, 2
        %v1055 = vsel %vm909, %v1053, %v1054
        %v1056 = vrot.slane %v1001, 2
        %v1057 = vsel %vm909, %v1054, %v1056
        %v1058 = vrot.slane %v1002, 2
        %v1059 = vrot.slane %v1003, 2
        %v1060 = vsel %vm909, %v1058, %v1059
        %v1061 = vrot.slane %v1004, 2
        %v1062 = vsel %vm909, %v1059, %v1061
        %v1063 = vrot.slane %v1005, 2
        %v1064 = vrot.slane %v1006, 2
        %v1065 = vsel %vm909, %v1063, %v1064
        %v1066 = vrot.slane %v1007, 2
        %v1067 = vsel %vm909, %v1064, %v1066
        %v1068 = vrot.slane %v1008, 2
        %v1069 = vrot.slane %v1009, 2
        %v1070 = vsel %vm909, %v1068, %v1069
        %v1071 = vrot.slane %v1010, 2
        %v1072 = vsel %vm909, %v1069, %v1071
        %v1073 = vrot.slane %v1011, 2
        %v1074 = vrot.slane %v1012, 2
        %v1075 = vsel %vm909, %v1073, %v1074
        %v1076 = vrot.slane %v1013, 2
        %v1077 = vsel %vm909, %v1074, %v1076
        %v1094 = vadd.f32 %v966, %v1040
        %v1095 = vadd.f32 %v967, %v1042
        %v1096 = vadd.f32 %v968, %v1045
        %v1097 = vadd.f32 %v969, %v1047
        %v1098 = vadd.f32 %v970, %v1050
        %v1099 = vadd.f32 %v971, %v1052
        %v1100 = vadd.f32 %v972, %v1055
        %v1101 = vadd.f32 %v973, %v1057
        %v1102 = vadd.f32 %v974, %v1060
        %v1103 = vadd.f32 %v975, %v1062
        %v1104 = vadd.f32 %v976, %v1065
        %v1105 = vadd.f32 %v977, %v1067
        %v1106 = vadd.f32 %v978, %v1070
        %v1107 = vadd.f32 %v979, %v1072
        %v1108 = vadd.f32 %v980, %v1075
        %v1109 = vadd.f32 %v981, %v1077
        %s1110 = scalar_lea.vmem %s2, 8
        %v1111 = vld [vmem:[%s1110] sm:$0x1]
        %v1113 = vlaneseq
        %v1114 = vshrl.u32 %v1113, 7
        %v1115 = vsub.s32 0, %v1114
        %v1116 = vrot.slane %v1111, %v1115
        %v1118 = vmul.f32 %v341, %v1116
        %v1119 = vmul.f32 %v342, %v1116
        %v1120 = vmul.f32 %v343, %v1116
        %v1121 = vmul.f32 %v344, %v1116
        %v1122 = vmul.f32 %v345, %v1116
        %v1123 = vmul.f32 %v346, %v1116
        %v1124 = vmul.f32 %v347, %v1116
        %v1125 = vmul.f32 %v348, %v1116
        %v1126 = vmul.f32 %v349, %v1116
        %v1127 = vmul.f32 %v350, %v1116
        %v1128 = vmul.f32 %v351, %v1116
        %v1129 = vmul.f32 %v352, %v1116
        %v1130 = vmul.f32 %v353, %v1116
        %v1131 = vmul.f32 %v354, %v1116
        %v1132 = vmul.f32 %v355, %v1116
        %v1133 = vmul.f32 %v356, %v1116
        %v1134 = vmul.f32 %v357, %v1116
        %v1135 = vmul.f32 %v358, %v1116
        %v1136 = vmul.f32 %v359, %v1116
        %v1137 = vmul.f32 %v360, %v1116
        %v1138 = vmul.f32 %v361, %v1116
        %v1139 = vmul.f32 %v362, %v1116
        %v1140 = vmul.f32 %v363, %v1116
        %v1141 = vmul.f32 %v364, %v1116
        %v1166 = vrot.slane %v1118, 2
        %v1167 = vrot.slane %v1119, 2
        %v1168 = vsel %vm909, %v1166, %v1167
        %v1169 = vrot.slane %v1120, 2
        %v1170 = vsel %vm909, %v1167, %v1169
        %v1171 = vrot.slane %v1121, 2
        %v1172 = vrot.slane %v1122, 2
        %v1173 = vsel %vm909, %v1171, %v1172
        %v1174 = vrot.slane %v1123, 2
        %v1175 = vsel %vm909, %v1172, %v1174
        %v1176 = vrot.slane %v1124, 2
        %v1177 = vrot.slane %v1125, 2
        %v1178 = vsel %vm909, %v1176, %v1177
        %v1179 = vrot.slane %v1126, 2
        %v1180 = vsel %vm909, %v1177, %v1179
        %v1181 = vrot.slane %v1127, 2
        %v1182 = vrot.slane %v1128, 2
        %v1183 = vsel %vm909, %v1181, %v1182
        %v1184 = vrot.slane %v1129, 2
        %v1185 = vsel %vm909, %v1182, %v1184
        %v1186 = vrot.slane %v1130, 2
        %v1187 = vrot.slane %v1131, 2
        %v1188 = vsel %vm909, %v1186, %v1187
        %v1189 = vrot.slane %v1132, 2
        %v1190 = vsel %vm909, %v1187, %v1189
        %v1191 = vrot.slane %v1133, 2
        %v1192 = vrot.slane %v1134, 2
        %v1193 = vsel %vm909, %v1191, %v1192
        %v1194 = vrot.slane %v1135, 2
        %v1195 = vsel %vm909, %v1192, %v1194
        %v1196 = vrot.slane %v1136, 2
        %v1197 = vrot.slane %v1137, 2
        %v1198 = vsel %vm909, %v1196, %v1197
        %v1199 = vrot.slane %v1138, 2
        %v1200 = vsel %vm909, %v1197, %v1199
        %v1201 = vrot.slane %v1139, 2
        %v1202 = vrot.slane %v1140, 2
        %v1203 = vsel %vm909, %v1201, %v1202
        %v1204 = vrot.slane %v1141, 2
        %v1205 = vsel %vm909, %v1202, %v1204
        %v1222 = vadd.f32 %v1094, %v1168
        %v1223 = vadd.f32 %v1095, %v1170
        %v1224 = vadd.f32 %v1096, %v1173
        %v1225 = vadd.f32 %v1097, %v1175
        %v1226 = vadd.f32 %v1098, %v1178
        %v1227 = vadd.f32 %v1099, %v1180
        %v1228 = vadd.f32 %v1100, %v1183
        %v1229 = vadd.f32 %v1101, %v1185
        %v1230 = vadd.f32 %v1102, %v1188
        %v1231 = vadd.f32 %v1103, %v1190
        %v1232 = vadd.f32 %v1104, %v1193
        %v1233 = vadd.f32 %v1105, %v1195
        %v1234 = vadd.f32 %v1106, %v1198
        %v1235 = vadd.f32 %v1107, %v1200
        %v1236 = vadd.f32 %v1108, %v1203
        %v1237 = vadd.f32 %v1109, %v1205
        %v1238 = vld [vmem:[%s3] sm:$0xf]
        %v1239 = vld [vmem:[%s4] sm:$0x1]
        %v1241 = vlaneseq
        %v1242 = vshrl.u32 %v1241, 7
        %v1243 = vsub.s32 0, %v1242
        %v1244 = vrot.slane %v1239, %v1243
        %vm1246 = vcmask 31744
        %v1248 = vsel %vm1246, %v1222, 0
        %v1251 = vsel %vm1246, %v1223, 0
        %v1254 = vsel %vm1246, %v1224, 0
        %v1257 = vsel %vm1246, %v1225, 0
        %v1260 = vsel %vm1246, %v1226, 0
        %v1263 = vsel %vm1246, %v1227, 0
        %v1266 = vsel %vm1246, %v1228, 0
        %v1269 = vsel %vm1246, %v1229, 0
        %v1272 = vsel %vm1246, %v1230, 0
        %v1275 = vsel %vm1246, %v1231, 0
        %v1278 = vsel %vm1246, %v1232, 0
        %v1281 = vsel %vm1246, %v1233, 0
        %v1284 = vsel %vm1246, %v1234, 0
        %v1287 = vsel %vm1246, %v1235, 0
        %v1290 = vsel %vm1246, %v1236, 0
        %v1293 = vsel %vm1246, %v1237, 0
        %vm1295 = vcmask 1043456
        %v1297 = vsel %vm1295, %v1238, 0
        %1299 = vmatprep.subr.mxu0 0.0
        %1300 = vmatpush1.msra.mxu0 0.0
        %1301 = vmatprep.subr.mxu0 0.0
        %1302 = vmatpush1.msra.mxu0 0.0
        %1303 = vmatprep.subr.mxu0 0.0
        %1304 = vmatpush1.msra.mxu0 0.0
        %1305 = vmatprep.subr.mxu0 0.0
        %1306 = vmatpush1.msra.mxu0 0.0
        %1307 = vmatprep.subr.mxu0 0.0
        %1308 = vmatpush1.msra.mxu0 0.0
        %1309 = vmatprep.subr.mxu0 0.0
        %1310 = vmatpush1.msra.mxu0 0.0
        %1311 = vmatprep.subr.mxu0 0.0
        %1312 = vmatpush1.msra.mxu0 0.0
        %1313 = vmatprep.subr.mxu0 0.0
        %1314 = vmatpush1.msra.mxu0 0.0
        %1315 = vmatprep.subr.mxu0 0.0
        %1316 = vmatpush1.msra.mxu0 0.0
        %1317 = vmatprep.subr.mxu0 0.0
        %1318 = vmatpush1.msra.mxu0 0.0
        %1319 = vmatprep.subr.mxu0 0.0
        %1320 = vmatpush1.msra.mxu0 0.0
        %1321 = vmatprep.subr.mxu0 0.0
        %1322 = vmatpush1.msra.mxu0 0.0
        %1323 = vmatprep.subr.mxu0 0.0
        %1324 = vmatpush1.msra.mxu0 0.0
        %1325 = vmatprep.subr.mxu0 0.0
        %1326 = vmatpush1.msra.mxu0 0.0
        %1327 = vmatprep.subr.mxu0 0.0
        %1328 = vmatpush1.msra.mxu0 0.0
        %1329 = vmatprep.subr.mxu0 0.0
        %1330 = vmatpush1.msra.mxu0 %v1297
        %1331 = vmatprep.subr.mxu0 0.0
        %1332 = vmatpush2.msra.mxu0 0.0
        %1333 = vmatprep.subr.mxu0 0.0
        %1334 = vmatpush2.msra.mxu0 0.0
        %1335 = vmatprep.subr.mxu0 0.0
        %1336 = vmatpush2.msra.mxu0 0.0
        %1337 = vmatprep.subr.mxu0 0.0
        %1338 = vmatpush2.msra.mxu0 0.0
        %1339 = vmatprep.subr.mxu0 0.0
        %1340 = vmatpush2.msra.mxu0 0.0
        %1341 = vmatprep.subr.mxu0 0.0
        %1342 = vmatpush2.msra.mxu0 0.0
        %1343 = vmatprep.subr.mxu0 0.0
        %1344 = vmatpush2.msra.mxu0 0.0
        %1345 = vmatprep.subr.mxu0 0.0
        %1346 = vmatpush2.msra.mxu0 0.0
        %1347 = vmatprep.subr.mxu0 0.0
        %1348 = vmatpush2.msra.mxu0 0.0
        %1349 = vmatprep.subr.mxu0 0.0
        %1350 = vmatpush2.msra.mxu0 0.0
        %1351 = vmatprep.subr.mxu0 0.0
        %1352 = vmatpush2.msra.mxu0 0.0
        %1353 = vmatprep.subr.mxu0 0.0
        %1354 = vmatpush2.msra.mxu0 0.0
        %1355 = vmatprep.subr.mxu0 0.0
        %1356 = vmatpush2.msra.mxu0 0.0
        %1357 = vmatprep.subr.mxu0 0.0
        %1358 = vmatpush2.msra.mxu0 0.0
        %1359 = vmatprep.subr.mxu0 0.0
        %1360 = vmatpush2.msra.mxu0 0.0
        %1361 = vmatprep.subr.mxu0 0.0
        %1362 = vmatpush2.msra.mxu0 0.0
        %1363 = vmatprep.mubr.f32.mxu0 0.0
        %1364 = vmatmul.mubr.f32.gmra.mxu0 %v1248
        %v1365 = vpop.f32.mrf.mxu0
        %v1366 = vadd.f32 %v1244, %v1365
        %v1367 = vpop.f32.mrf.mxu0
        %1368 = vmatprep.mubr.f32.mxu0 0.0
        %1369 = vmatmul.mubr.f32.gmra.mxu0 %v1251
        %v1370 = vpop.f32.mrf.mxu0
        %v1371 = vadd.f32 %v1244, %v1370
        %v1372 = vpop.f32.mrf.mxu0
        %1373 = vmatprep.mubr.f32.mxu0 0.0
        %1374 = vmatmul.mubr.f32.gmra.mxu0 %v1254
        %v1375 = vpop.f32.mrf.mxu0
        %v1376 = vadd.f32 %v1244, %v1375
        %v1377 = vpop.f32.mrf.mxu0
        %1378 = vmatprep.mubr.f32.mxu0 0.0
        %1379 = vmatmul.mubr.f32.gmra.mxu0 %v1257
        %v1380 = vpop.f32.mrf.mxu0
        %v1381 = vadd.f32 %v1244, %v1380
        %v1382 = vpop.f32.mrf.mxu0
        %1383 = vmatprep.mubr.f32.mxu0 0.0
        %1384 = vmatmul.mubr.f32.gmra.mxu0 %v1260
        %v1385 = vpop.f32.mrf.mxu0
        %v1386 = vadd.f32 %v1244, %v1385
        %v1387 = vpop.f32.mrf.mxu0
        %1388 = vmatprep.mubr.f32.mxu0 0.0
        %1389 = vmatmul.mubr.f32.gmra.mxu0 %v1263
        %v1390 = vpop.f32.mrf.mxu0
        %v1391 = vadd.f32 %v1244, %v1390
        %v1392 = vpop.f32.mrf.mxu0
        %1393 = vmatprep.mubr.f32.mxu0 0.0
        %1394 = vmatmul.mubr.f32.gmra.mxu0 %v1266
        %v1395 = vpop.f32.mrf.mxu0
        %v1396 = vadd.f32 %v1244, %v1395
        %v1397 = vpop.f32.mrf.mxu0
        %1398 = vmatprep.mubr.f32.mxu0 0.0
        %1399 = vmatmul.mubr.f32.gmra.mxu0 %v1269
        %v1400 = vpop.f32.mrf.mxu0
        %v1401 = vadd.f32 %v1244, %v1400
        %v1402 = vpop.f32.mrf.mxu0
        %1403 = vmatprep.mubr.f32.mxu0 0.0
        %1404 = vmatmul.mubr.f32.gmra.mxu0 %v1272
        %v1405 = vpop.f32.mrf.mxu0
        %v1406 = vadd.f32 %v1244, %v1405
        %v1407 = vpop.f32.mrf.mxu0
        %1408 = vmatprep.mubr.f32.mxu0 0.0
        %1409 = vmatmul.mubr.f32.gmra.mxu0 %v1275
        %v1410 = vpop.f32.mrf.mxu0
        %v1411 = vadd.f32 %v1244, %v1410
        %v1412 = vpop.f32.mrf.mxu0
        %1413 = vmatprep.mubr.f32.mxu0 0.0
        %1414 = vmatmul.mubr.f32.gmra.mxu0 %v1278
        %v1415 = vpop.f32.mrf.mxu0
        %v1416 = vadd.f32 %v1244, %v1415
        %v1417 = vpop.f32.mrf.mxu0
        %1418 = vmatprep.mubr.f32.mxu0 0.0
        %1419 = vmatmul.mubr.f32.gmra.mxu0 %v1281
        %v1420 = vpop.f32.mrf.mxu0
        %v1421 = vadd.f32 %v1244, %v1420
        %v1422 = vpop.f32.mrf.mxu0
        %1423 = vmatprep.mubr.f32.mxu0 0.0
        %1424 = vmatmul.mubr.f32.gmra.mxu0 %v1284
        %v1425 = vpop.f32.mrf.mxu0
        %v1426 = vadd.f32 %v1244, %v1425
        %v1427 = vpop.f32.mrf.mxu0
        %1428 = vmatprep.mubr.f32.mxu0 0.0
        %1429 = vmatmul.mubr.f32.gmra.mxu0 %v1287
        %v1430 = vpop.f32.mrf.mxu0
        %v1431 = vadd.f32 %v1244, %v1430
        %v1432 = vpop.f32.mrf.mxu0
        %1433 = vmatprep.mubr.f32.mxu0 0.0
        %1434 = vmatmul.mubr.f32.gmra.mxu0 %v1290
        %v1435 = vpop.f32.mrf.mxu0
        %v1436 = vadd.f32 %v1244, %v1435
        %v1437 = vpop.f32.mrf.mxu0
        %1438 = vmatprep.mubr.f32.mxu0 0.0
        %1439 = vmatmul.mubr.f32.gmra.mxu0 %v1293
        %v1440 = vpop.f32.mrf.mxu0
        %v1441 = vadd.f32 %v1244, %v1440
        %v1442 = vpop.f32.mrf.mxu0
        %1443 = vdwg.mxu0
        %1444 = vst [vmem:[%s297] sm:$0xff] %v1366
        %1445 = vst [vmem:[%s297 + $0x8] sm:$0xff] %v1371
        %1446 = vst [vmem:[%s297 + $0x10] sm:$0xff] %v1376
        %1447 = vst [vmem:[%s297 + $0x18] sm:$0xff] %v1381
        %1448 = vst [vmem:[%s297 + $0x20] sm:$0xff] %v1386
        %1449 = vst [vmem:[%s297 + $0x28] sm:$0xff] %v1391
        %1450 = vst [vmem:[%s297 + $0x30] sm:$0xff] %v1396
        %1451 = vst [vmem:[%s297 + $0x38] sm:$0xff] %v1401
        %1452 = vst [vmem:[%s297 + $0x40] sm:$0xff] %v1406
        %1453 = vst [vmem:[%s297 + $0x48] sm:$0xff] %v1411
        %1454 = vst [vmem:[%s297 + $0x50] sm:$0xff] %v1416
        %1455 = vst [vmem:[%s297 + $0x58] sm:$0xff] %v1421
        %1456 = vst [vmem:[%s297 + $0x60] sm:$0xff] %v1426
        %1457 = vst [vmem:[%s297 + $0x68] sm:$0xff] %v1431
        %1458 = vst [vmem:[%s297 + $0x70] sm:$0xff] %v1436
        %1459 = vst [vmem:[%s297 + $0x78] sm:$0xff] %v1441
        %s1460 = sand.u32 %s164, 1
        %s1461 = scalar_lea.sflag [#allocation3], %s1460
        %s1462 = sand.u32 %s164, 1
        %s1463 = smul.addr %s1462, 128
        %s1464 = scalar_lea.vmem [#allocation2], %s1463
        // Predicated region
        $region41: #{tpu_custom_call.1} parent=39 // pred_check
          %p1465 = pneg %p174
        $region42: #{tpu_custom_call.1} parent=39 // pred_check_branch
          %1467 = sbr.rel (%p1465) target = $region44
        $region43: #{tpu_custom_call.1} parent=39 // pred_region
          %s1468 = smul.u32 8, %s24
          %s1470 = ssub.s32 2048, 2048
          %1471 = vsyncadd %s1461, %s1470
          %s1472 = smul.addr %s1468, 2
          %s1473 = smul.addr %s23, 32
          %s1474 = sadd.s32 %s1472, %s1473
          %s1475 = smul.addr %s1474, 128
          %s1476 = scalar_lea.hbm %s5, %s1475
          %s1477 = sshll.u32 %s1464, 4
          %s1478 = int_to_ptr.vmem [resolvable:$true] %s1477
          %1483 = dma.vmem_to_hbm [thread:$0]  %s1478, 2048, %s1476, %s1461, 128, 128, 8
        $region44: #{tpu_custom_call.1} parent=39 // pred_fallthru
          _
      $region40: #{tpu_custom_call.1} parent=5 // pred_fallthru
        _
      %p1484 = scmp.le.s32.totalorder 2, %s14
      // Predicated region
      $region45: #{tpu_custom_call.1} parent=5 // pred_check
        %p1485 = pneg %p1484
      $region46: #{tpu_custom_call.1} parent=5 // pred_check_branch
        %1487 = sbr.rel (%p1485) target = $region48
      $region47: #{tpu_custom_call.1} parent=5 // pred_region
        %s1488 = ssub.s32 %s14, 2
        // Predicated region
        $region49: #{tpu_custom_call.1} parent=47 // pred_check
          %p1489 = pneg %p180
        $region50: #{tpu_custom_call.1} parent=47 // pred_check_branch
          %1491 = sbr.rel (%p1489) target = $region52
        $region51: #{tpu_custom_call.1} parent=47 // pred_region
          %s1492 = sand.u32 %s165, 1
          %s1493 = scalar_lea.sflag [#allocation3], %s1492
          %s1494 = sand.u32 %s165, 1
          %s1495 = smul.addr %s1494, 128
          %s1496 = scalar_lea.vmem [#allocation2], %s1495
          %1497 = dma.done %s1493, 2048
        $region52: #{tpu_custom_call.1} parent=47 // pred_fallthru
          _
      $region48: #{tpu_custom_call.1} parent=5 // pred_fallthru
        _
    $region6: #{tpu_custom_call.1} parent=1 // loop_footer
      %s18 = sadd.s32 1, %s14
    $region7: #{tpu_custom_call.1} parent=1 // loop_footer_branch
      %13 = sbr.rel target = $region3
    $region8: #{tpu_custom_call.1} parent=1 // loop_exit
      _
    %1498 = vsyncpa [#allocation3], 1
    %s1499 = scalar_lea.sflag [#allocation3], 1
    %1500 = vsyncpa %s1499, 1

// kernel: tpu_custom_call.1
$region0: #{tpu_custom_call.1}
  #allocation0 [shape = 'u32[]', space=smem, size = 0x4, offset = 0x4, fixed_abs, tag = 'smem constant byte address 0x4 - core index']
  #allocation1 [shape = 'u32[144,128]{1,0:T(1,128)}', space=vmem, size = 0x12000, scoped, tag = 'internal scratch']
  %s0 = inlined_call_operand.vmem [shape: f32[2,18,18,4], index: 0, kind: input, shape index: {}]
  %s1 = inlined_call_operand.vmem [shape: f32[2,18,18,4], index: 1, kind: input, shape index: {}]
  %s2 = inlined_call_operand.vmem [shape: f32[3,3,1,4], index: 2, kind: input, shape index: {}]
  %s3 = inlined_call_operand.vmem [shape: f32[4,128], index: 3, kind: input, shape index: {}]
  %s4 = inlined_call_operand.vmem [shape: f32[1,128], index: 4, kind: input, shape index: {}]
  %s5 = inlined_call_operand.hbm [shape: f32[2,16,16,128], index: 5, kind: output, shape index: {}]
  %s6 = sld [smem:[#allocation0]]
  $region53: #{tpu_custom_call.1} parent=0
    _
  %s8 = ssub.s32 1, %s6
  %s9 = scalar_select 0, %s8, %s6
  $region1: #{tpu_custom_call.1} parent=0
    #allocation2 [shape = 'u8[131072]{0}', space=vmem, size = 0x20000, scoped, tag = 'output window, operand 0']
    #allocation3 [shape = 's32[2]{0}', space=sflag, size = 0x8, scoped, tag = 'scoped memory for tpu_custom_call.1']
    %10 = vsyncpa [#allocation3], 0
    %s11 = scalar_lea.sflag [#allocation3], 1
    %12 = vsyncpa %s11, 0
    loop: start=0, step=1, limit=6
    $region2: #{tpu_custom_call.1} parent=1 // loop_pre_header
      _
    $region3: #{tpu_custom_call.1} parent=1 // loop_header
      %s14 = sphi 0, %s18
      %p15 = scmp.ge.s32.totalorder %s14, 6
      %s21 = sphi 0, %s33
      %s22 = sphi 0, %s29
      %s23 = sphi 0, %s21
      %s24 = sphi 0, %s22
      %s25 = sphi 0, %s23
      %s26 = sphi 0, %s24
      %s38 = sphi 0, %s40
      %s41 = sphi 0, %s38
      %s42 = sphi 0, %s41
      %s58 = sphi 0, %s42
      %s70 = sphi 0, %s72
      %s73 = sphi 0, %s70
      %s74 = sphi 0, %s73
      %s90 = sphi 0, %s74
      %s94 = sphi 0, %s94
      %s96 = sphi 0, %s94
      %s97 = sphi 0, %s96
      %s111 = sphi 0, %s97
      %s115 = sphi 0, %s115
      %s117 = sphi 0, %s115
      %s118 = sphi 0, %s117
      %s132 = sphi 0, %s118
      %s136 = sphi 0, %s136
      %s138 = sphi 0, %s136
      %s139 = sphi 0, %s138
      %s153 = sphi 0, %s139
      %s161 = sphi 0, %s163
      %s164 = sphi 0, %s161
      %s165 = sphi 0, %s164
      %s181 = sphi 0, %s165
    $region4: #{tpu_custom_call.1} parent=1 // loop_header_branch
      %17 = sbr.rel (%p15) target = $region8
    $region5: #{tpu_custom_call.1} parent=1 // loop_body
      %s19 = ssub.s32 %s14, 1
      %s20 = ssub.s32 %s14, 2
      %s27 = sadd.s32 1, %s22
      %p28 = scmp.ge.s32.totalorder %s27, 2
      %s29 = scalar_select %p28, 0, %s27
      %s30 = sadd.s32 1, %s21
      %s31 = scalar_select %p28, %s30, %s21
      %p32 = scmp.ge.s32.totalorder %s31, 2
      %s33 = scalar_select %p32, 0, %s31
      %s34 = ssub.s32 %s21, %s33
      %s35 = ssub.s32 %s22, %s29
      %s36 = sor.u32 %s34, %s35
      %p37 = scmp.eq.s32.totalorder %s36, 0
      %s39 = sadd.s32 %s38, 1
      %s40 = scalar_select %p37, %s38, %s39
      %p43 = pneg %p37
      %p44 = scmp.eq.s32.totalorder %s14, 3
      %p45 = por %p43, %p44
      %p46 = scmp.ne.s32.totalorder %s38, %s41
      %p47 = scmp.eq.s32.totalorder %s14, 0
      %p48 = por %p46, %p47
      %p49 = scmp.ne.s32.totalorder %s38, %s41
      %p50 = scmp.eq.s32.totalorder %s19, 3
      %p51 = por %p49, %p50
      %p52 = scmp.ne.s32.totalorder %s41, %s42
      %p53 = scmp.eq.s32.totalorder %s19, 0
      %p54 = por %p52, %p53
      %p55 = scmp.ne.s32.totalorder %s41, %s42
      %p56 = scmp.eq.s32.totalorder %s20, 3
      %p57 = por %p55, %p56
      %p59 = scmp.ne.s32.totalorder %s42, %s58
      %p60 = scmp.eq.s32.totalorder %s20, 0
      %p61 = por %p59, %p60
      %s62 = sadd.s32 %s22, 1
      %s63 = smul.u32 %s62, 4
      %s64 = sadd.s32 %s29, 1
      %s65 = smul.u32 %s64, 4
      %s66 = ssub.s32 %s21, %s33
      %s67 = ssub.s32 %s63, %s65
      %s68 = sor.u32 %s66, %s67
      %p69 = scmp.eq.s32.totalorder %s68, 0
      %s71 = sadd.s32 %s70, 1
      %s72 = scalar_select %p69, %s70, %s71
      %p75 = pneg %p69
      %p76 = scmp.eq.s32.totalorder %s14, 3
      %p77 = por %p75, %p76
      %p78 = scmp.ne.s32.totalorder %s70, %s73
      %p79 = scmp.eq.s32.totalorder %s14, 0
      %p80 = por %p78, %p79
      %p81 = scmp.ne.s32.totalorder %s70, %s73
      %p82 = scmp.eq.s32.totalorder %s19, 3
      %p83 = por %p81, %p82
      %p84 = scmp.ne.s32.totalorder %s73, %s74
      %p85 = scmp.eq.s32.totalorder %s19, 0
      %p86 = por %p84, %p85
      %p87 = scmp.ne.s32.totalorder %s73, %s74
      %p88 = scmp.eq.s32.totalorder %s20, 3
      %p89 = por %p87, %p88
      %p91 = scmp.ne.s32.totalorder %s74, %s90
      %p92 = scmp.eq.s32.totalorder %s20, 0
      %p93 = por %p91, %p92
      %s95 = sadd.s32 %s94, 1
      %p98 = scmp.eq.s32.totalorder %s14, 3
      %p99 = scmp.ne.s32.totalorder %s94, %s96
      %p100 = scmp.eq.s32.totalorder %s14, 0
      %p101 = por %p99, %p100
      %p102 = scmp.ne.s32.totalorder %s94, %s96
      %p103 = scmp.eq.s32.totalorder %s19, 3
      %p104 = por %p102, %p103
      %p105 = scmp.ne.s32.totalorder %s96, %s97
      %p106 = scmp.eq.s32.totalorder %s19, 0
      %p107 = por %p105, %p106
      %p108 = scmp.ne.s32.totalorder %s96, %s97
      %p109 = scmp.eq.s32.totalorder %s20, 3
      %p110 = por %p108, %p109
      %p112 = scmp.ne.s32.totalorder %s97, %s111
      %p113 = scmp.eq.s32.totalorder %s20, 0
      %p114 = por %p112, %p113
      %s116 = sadd.s32 %s115, 1
      %p119 = scmp.eq.s32.totalorder %s14, 3
      %p120 = scmp.ne.s32.totalorder %s115, %s117
      %p121 = scmp.eq.s32.totalorder %s14, 0
      %p122 = por %p120, %p121
      %p123 = scmp.ne.s32.totalorder %s115, %s117
      %p124 = scmp.eq.s32.totalorder %s19, 3
      %p125 = por %p123, %p124
      %p126 = scmp.ne.s32.totalorder %s117, %s118
      %p127 = scmp.eq.s32.totalorder %s19, 0
      %p128 = por %p126, %p127
      %p129 = scmp.ne.s32.totalorder %s117, %s118
      %p130 = scmp.eq.s32.totalorder %s20, 3
      %p131 = por %p129, %p130
      %p133 = scmp.ne.s32.totalorder %s118, %s132
      %p134 = scmp.eq.s32.totalorder %s20, 0
      %p135 = por %p133, %p134
      %s137 = sadd.s32 %s136, 1
      %p140 = scmp.eq.s32.totalorder %s14, 3
      %p141 = scmp.ne.s32.totalorder %s136, %s138
      %p142 = scmp.eq.s32.totalorder %s14, 0
      %p143 = por %p141, %p142
      %p144 = scmp.ne.s32.totalorder %s136, %s138
      %p145 = scmp.eq.s32.totalorder %s19, 3
      %p146 = por %p144, %p145
      %p147 = scmp.ne.s32.totalorder %s138, %s139
      %p148 = scmp.eq.s32.totalorder %s19, 0
      %p149 = por %p147, %p148
      %p150 = scmp.ne.s32.totalorder %s138, %s139
      %p151 = scmp.eq.s32.totalorder %s20, 3
      %p152 = por %p150, %p151
      %p154 = scmp.ne.s32.totalorder %s139, %s153
      %p155 = scmp.eq.s32.totalorder %s20, 0
      %p156 = por %p154, %p155
      %s157 = ssub.s32 %s21, %s33
      %s158 = ssub.s32 %s22, %s29
      %s159 = sor.u32 %s157, %s158
      %p160 = scmp.eq.s32.totalorder %s159, 0
      %s162 = sadd.s32 %s161, 1
      %s163 = scalar_select %p160, %s161, %s162
      %p166 = pneg %p160
      %p167 = scmp.eq.s32.totalorder %s14, 3
      %p168 = por %p166, %p167
      %p169 = scmp.ne.s32.totalorder %s161, %s164
      %p170 = scmp.eq.s32.totalorder %s14, 0
      %p171 = por %p169, %p170
      %p172 = scmp.ne.s32.totalorder %s161, %s164
      %p173 = scmp.eq.s32.totalorder %s19, 3
      %p174 = por %p172, %p173
      %p175 = scmp.ne.s32.totalorder %s164, %s165
      %p176 = scmp.eq.s32.totalorder %s19, 0
      %p177 = por %p175, %p176
      %p178 = scmp.ne.s32.totalorder %s164, %s165
      %p179 = scmp.eq.s32.totalorder %s20, 3
      %p180 = por %p178, %p179
      %p182 = scmp.ne.s32.totalorder %s165, %s181
      %p183 = scmp.eq.s32.totalorder %s20, 0
      %p184 = por %p182, %p183
      %p185 = scmp.le.s32.totalorder 1, %s14
      %p186 = scmp.lt.s32.totalorder %s14, 5
      %p187 = pnand %p185, %p186
      %p188 = pneg %p187
      // Predicated region
      $region9: #{tpu_custom_call.1} parent=5 // pred_check
        _
      $region10: #{tpu_custom_call.1} parent=5 // pred_check_branch
        %190 = sbr.rel (%p187) target = $region12
      $region11: #{tpu_custom_call.1} parent=5 // pred_region
        %s191 = ssub.s32 %s14, 1
        // Predicated region
        $region13: #{tpu_custom_call.1} parent=11 // pred_check
          %p192 = pneg %p107
        $region14: #{tpu_custom_call.1} parent=11 // pred_check_branch
          %194 = sbr.rel (%p192) target = $region16
        $region15: #{tpu_custom_call.1} parent=11 // pred_region
          _
        $region16: #{tpu_custom_call.1} parent=11 // pred_fallthru
          _
        // Predicated region
        $region17: #{tpu_custom_call.1} parent=11 // pred_check
          %p195 = pneg %p128
        $region18: #{tpu_custom_call.1} parent=11 // pred_check_branch
          %197 = sbr.rel (%p195) target = $region20
        $region19: #{tpu_custom_call.1} parent=11 // pred_region
          _
        $region20: #{tpu_custom_call.1} parent=11 // pred_fallthru
          _
        // Predicated region
        $region21: #{tpu_custom_call.1} parent=11 // pred_check
          %p198 = pneg %p149
        $region22: #{tpu_custom_call.1} parent=11 // pred_check_branch
          %200 = sbr.rel (%p198) target = $region24
        $region23: #{tpu_custom_call.1} parent=11 // pred_region
          _
        $region24: #{tpu_custom_call.1} parent=11 // pred_fallthru
          _
      $region12: #{tpu_custom_call.1} parent=5 // pred_fallthru
        _
      %p201 = scmp.lt.s32.totalorder %s14, 4
      // Predicated region
      $region25: #{tpu_custom_call.1} parent=5 // pred_check
        %p202 = pneg %p201
      $region26: #{tpu_custom_call.1} parent=5 // pred_check_branch
        %204 = sbr.rel (%p202) target = $region28
      $region27: #{tpu_custom_call.1} parent=5 // pred_region
        // Predicated region
        $region29: #{tpu_custom_call.1} parent=27 // pred_check
          %p205 = pneg %p48
        $region30: #{tpu_custom_call.1} parent=27 // pred_check_branch
          %207 = sbr.rel (%p205) target = $region32
        $region31: #{tpu_custom_call.1} parent=27 // pred_region
          %s208 = smul.u32 8, %s22
          %s209 = ssub.s32 18, %s208
          %p210 = scmp.lt.s32.totalorder %s209, 8
          %s211 = scalar_select %p210, %s209, 8
          %s212 = smul.u32 128, %s211
          %s213 = smul.u32 %s212, 3
          %p214 = scmp.lt.s32.totalorder %s21, 1
          %s215 = scalar_select %p214, %s21, 1
          %p216 = scmp.lt.s32.totalorder %s208, 17
          %s217 = scalar_select %p216, %s208, 17
          %s218 = smul.addr %s217, 3
          %s219 = smul.addr %s215, 54
          %s220 = sadd.s32 %s218, %s219
          %s221 = smul.addr %s220, 8
          %s222 = scalar_lea.vmem %s0, %s221
          %s223 = smul.u32 8, %s22
          %s224 = ssub.s32 18, %s223
          %p225 = scmp.lt.s32.totalorder %s224, 8
          %s226 = scalar_select %p225, %s224, 8
          %s227 = smul.u32 128, %s226
          %s228 = smul.u32 %s227, 3
        $region32: #{tpu_custom_call.1} parent=27 // pred_fallthru
          _
        // Predicated region
        $region33: #{tpu_custom_call.1} parent=27 // pred_check
          %p229 = pneg %p80
        $region34: #{tpu_custom_call.1} parent=27 // pred_check_branch
          %231 = sbr.rel (%p229) target = $region36
        $region35: #{tpu_custom_call.1} parent=27 // pred_region
          %s232 = sadd.s32 %s22, 1
          %s233 = smul.u32 %s232, 4
          %s234 = smul.u32 2, %s233
          %p235 = scmp.lt.s32.totalorder %s21, 1
          %s236 = scalar_select %p235, %s21, 1
          %p237 = scmp.lt.s32.totalorder %s234, 17
          %s238 = scalar_select %p237, %s234, 17
          %s239 = smul.addr %s238, 3
          %s240 = smul.addr %s236, 54
          %s241 = sadd.s32 %s239, %s240
          %s242 = smul.addr %s241, 8
          %s243 = scalar_lea.vmem %s1, %s242
          %s244 = sadd.s32 %s22, 1
          %s245 = smul.u32 %s244, 4
          %s246 = smul.u32 2, %s245
        $region36: #{tpu_custom_call.1} parent=27 // pred_fallthru
          _
      $region28: #{tpu_custom_call.1} parent=5 // pred_fallthru
        _
      %p247 = scmp.le.s32.totalorder 1, %s14
      %p248 = scmp.lt.s32.totalorder %s14, 5
      %p249 = pnand %p247, %p248
      %p250 = pneg %p249
      // Predicated region
      $region37: #{tpu_custom_call.1} parent=5 // pred_check
        _
      $region38: #{tpu_custom_call.1} parent=5 // pred_check_branch
        %252 = sbr.rel (%p249) target = $region40
      $region39: #{tpu_custom_call.1} parent=5 // pred_region
        %s253 = ssub.s32 %s14, 1
        %s254 = smul.u32 8, %s24
        %s255 = ssub.s32 18, %s254
        %p256 = scmp.lt.s32.totalorder %s255, 8
        %s257 = scalar_select %p256, %s255, 8
        %s258 = smul.u32 128, %s257
        %s259 = smul.u32 %s258, 3
        %p260 = scmp.lt.s32.totalorder %s23, 1
        %s261 = scalar_select %p260, %s23, 1
        %p262 = scmp.lt.s32.totalorder %s254, 17
        %s263 = scalar_select %p262, %s254, 17
        %s264 = smul.addr %s263, 3
        %s265 = smul.addr %s261, 54
        %s266 = sadd.s32 %s264, %s265
        %s267 = smul.addr %s266, 8
        %s268 = scalar_lea.vmem %s0, %s267
        %p269 = pneg %p54
        %p270 = pneg %p51
        %s271 = sadd.s32 %s24, 1
        %s272 = smul.u32 %s271, 4
        %s273 = smul.u32 2, %s272
        %p274 = scmp.lt.s32.totalorder %s23, 1
        %s275 = scalar_select %p274, %s23, 1
        %p276 = scmp.lt.s32.totalorder %s273, 17
        %s277 = scalar_select %p276, %s273, 17
        %s278 = smul.addr %s277, 3
        %s279 = smul.addr %s275, 54
        %s280 = sadd.s32 %s278, %s279
        %s281 = smul.addr %s280, 8
        %s282 = scalar_lea.vmem %s1, %s281
        %p283 = pneg %p86
        %p284 = pneg %p83
        %p285 = pneg %p107
        %p286 = pneg %p104
        %p287 = pneg %p128
        %p288 = pneg %p125
        %p289 = pneg %p149
        %p290 = pneg %p146
        %p291 = pneg %p177
        %p292 = pneg %p174
        %s293 = sand.u32 %s164, 1
        %s294 = scalar_lea.sflag [#allocation3], %s293
        %s295 = sand.u32 %s164, 1
        %s296 = smul.addr %s295, 128
        %s297 = scalar_lea.vmem [#allocation2], %s296
        %s298 = smul.u32 8, %s24
        %s299 = ssub.s32 18, %s298
        %p300 = scmp.lt.s32.totalorder %s299, 8
        %s301 = scalar_select %p300, %s299, 8
        %s302 = smul.u32 128, %s301
        %s303 = smul.u32 %s302, 3
        %p304 = scmp.lt.s32.totalorder %s23, 1
        %s305 = scalar_select %p304, %s23, 1
        %p306 = scmp.lt.s32.totalorder %s298, 17
        %s307 = scalar_select %p306, %s298, 17
        %s308 = smul.addr %s307, 3
        %s309 = smul.addr %s305, 54
        %s310 = sadd.s32 %s308, %s309
        %s311 = smul.addr %s310, 8
        %s312 = scalar_lea.vmem %s0, %s311
        %s313 = smul.u32 8, %s24
        %s314 = ssub.s32 18, %s313
        %p315 = scmp.lt.s32.totalorder %s314, 8
        %s316 = scalar_select %p315, %s314, 8
        %s317 = smul.u32 128, %s316
        %s318 = smul.u32 %s317, 3
        %s319 = sadd.s32 %s24, 1
        %s320 = smul.u32 %s319, 4
        %s321 = smul.u32 2, %s320
        %p322 = scmp.lt.s32.totalorder %s23, 1
        %s323 = scalar_select %p322, %s23, 1
        %p324 = scmp.lt.s32.totalorder %s321, 17
        %s325 = scalar_select %p324, %s321, 17
        %s326 = smul.addr %s325, 3
        %s327 = smul.addr %s323, 54
        %s328 = sadd.s32 %s326, %s327
        %s329 = smul.addr %s328, 8
        %s330 = scalar_lea.vmem %s1, %s329
        %s331 = sadd.s32 %s24, 1
        %s332 = smul.u32 %s331, 4
        %s333 = smul.u32 2, %s332
        %s334 = smul.u32 8, %s24
        %v335 = vld [vmem:[%s312] sm:$0xff]
        %v336 = vld [vmem:[%s312 + $0x8] sm:$0xff]
        %v337 = vld [vmem:[%s312 + $0x10] sm:$0x3]
        %v338 = vld [vmem:[%s312 + $0x18] sm:$0xff]
        %v339 = vld [vmem:[%s312 + $0x20] sm:$0xff]
        %v340 = vld [vmem:[%s312 + $0x28] sm:$0x3]
        %v341 = vld [vmem:[%s312 + $0x30] sm:$0xff]
        %v342 = vld [vmem:[%s312 + $0x38] sm:$0xff]
        %v343 = vld [vmem:[%s312 + $0x40] sm:$0x3]
        %v344 = vld [vmem:[%s312 + $0x48] sm:$0xff]
        %v345 = vld [vmem:[%s312 + $0x50] sm:$0xff]
        %v346 = vld [vmem:[%s312 + $0x58] sm:$0x3]
        %v347 = vld [vmem:[%s312 + $0x60] sm:$0xff]
        %v348 = vld [vmem:[%s312 + $0x68] sm:$0xff]
        %v349 = vld [vmem:[%s312 + $0x70] sm:$0x3]
        %v350 = vld [vmem:[%s312 + $0x78] sm:$0xff]
        %v351 = vld [vmem:[%s312 + $0x80] sm:$0xff]
        %v352 = vld [vmem:[%s312 + $0x88] sm:$0x3]
        %v353 = vld [vmem:[%s312 + $0x90] sm:$0xff]
        %v354 = vld [vmem:[%s312 + $0x98] sm:$0xff]
        %v355 = vld [vmem:[%s312 + $0xa0] sm:$0x3]
        %v356 = vld [vmem:[%s312 + $0xa8] sm:$0xff]
        %v357 = vld [vmem:[%s312 + $0xb0] sm:$0xff]
        %v358 = vld [vmem:[%s312 + $0xb8] sm:$0x3]
        %v359 = vld [vmem:[%s330] sm:$0xff]
        %v360 = vld [vmem:[%s330 + $0x8] sm:$0xff]
        %v361 = vld [vmem:[%s330 + $0x10] sm:$0x3]
        %v362 = vld [vmem:[%s330 + $0x18] sm:$0xff]
        %v363 = vld [vmem:[%s330 + $0x20] sm:$0xff]
        %v364 = vld [vmem:[%s330 + $0x28] sm:$0x3]
        %v365 = vld [vmem:[%s2] sm:$0x1]
        %v367 = vlaneseq
        %v368 = vshrl.u32 %v367, 7
        %v369 = vsub.s32 0, %v368
        %v370 = vrot.slane %v365, %v369
        %v372 = vmul.f32 %v335, %v370
        %v373 = vmul.f32 %v336, %v370
        %v374 = vmul.f32 %v338, %v370
        %v375 = vmul.f32 %v339, %v370
        %v376 = vmul.f32 %v341, %v370
        %v377 = vmul.f32 %v342, %v370
        %v378 = vmul.f32 %v344, %v370
        %v379 = vmul.f32 %v345, %v370
        %v380 = vmul.f32 %v347, %v370
        %v381 = vmul.f32 %v348, %v370
        %v382 = vmul.f32 %v350, %v370
        %v383 = vmul.f32 %v351, %v370
        %v384 = vmul.f32 %v353, %v370
        %v385 = vmul.f32 %v354, %v370
        %v386 = vmul.f32 %v356, %v370
        %v387 = vmul.f32 %v357, %v370
        %s388 = scalar_lea.vmem %s2, 3
        %v389 = vld [vmem:[%s388] sm:$0x1]
        %v391 = vlaneseq
        %v392 = vshrl.u32 %v391, 7
        %v393 = vsub.s32 0, %v392
        %v394 = vrot.slane %v389, %v393
        %v396 = vmul.f32 %v338, %v394
        %v397 = vmul.f32 %v339, %v394
        %v398 = vmul.f32 %v341, %v394
        %v399 = vmul.f32 %v342, %v394
        %v400 = vmul.f32 %v344, %v394
        %v401 = vmul.f32 %v345, %v394
        %v402 = vmul.f32 %v347, %v394
        %v403 = vmul.f32 %v348, %v394
        %v404 = vmul.f32 %v350, %v394
        %v405 = vmul.f32 %v351, %v394
        %v406 = vmul.f32 %v353, %v394
        %v407 = vmul.f32 %v354, %v394
        %v408 = vmul.f32 %v356, %v394
        %v409 = vmul.f32 %v357, %v394
        %v410 = vmul.f32 %v359, %v394
        %v411 = vmul.f32 %v360, %v394
        %v412 = vadd.f32 %v372, %v396
        %v413 = vadd.f32 %v373, %v397
        %v414 = vadd.f32 %v374, %v398
        %v415 = vadd.f32 %v375, %v399
        %v416 = vadd.f32 %v376, %v400
        %v417 = vadd.f32 %v377, %v401
        %v418 = vadd.f32 %v378, %v402
        %v419 = vadd.f32 %v379, %v403
        %v420 = vadd.f32 %v380, %v404
        %v421 = vadd.f32 %v381, %v405
        %v422 = vadd.f32 %v382, %v406
        %v423 = vadd.f32 %v383, %v407
        %v424 = vadd.f32 %v384, %v408
        %v425 = vadd.f32 %v385, %v409
        %v426 = vadd.f32 %v386, %v410
        %v427 = vadd.f32 %v387, %v411
        %s428 = scalar_lea.vmem %s2, 6
        %v429 = vld [vmem:[%s428] sm:$0x1]
        %v431 = vlaneseq
        %v432 = vshrl.u32 %v431, 7
        %v433 = vsub.s32 0, %v432
        %v434 = vrot.slane %v429, %v433
        %v436 = vmul.f32 %v341, %v434
        %v437 = vmul.f32 %v342, %v434
        %v438 = vmul.f32 %v344, %v434
        %v439 = vmul.f32 %v345, %v434
        %v440 = vmul.f32 %v347, %v434
        %v441 = vmul.f32 %v348, %v434
        %v442 = vmul.f32 %v350, %v434
        %v443 = vmul.f32 %v351, %v434
        %v444 = vmul.f32 %v353, %v434
        %v445 = vmul.f32 %v354, %v434
        %v446 = vmul.f32 %v356, %v434
        %v447 = vmul.f32 %v357, %v434
        %v448 = vmul.f32 %v359, %v434
        %v449 = vmul.f32 %v360, %v434
        %v450 = vmul.f32 %v362, %v434
        %v451 = vmul.f32 %v363, %v434
        %v452 = vadd.f32 %v412, %v436
        %v453 = vadd.f32 %v413, %v437
        %v454 = vadd.f32 %v414, %v438
        %v455 = vadd.f32 %v415, %v439
        %v456 = vadd.f32 %v416, %v440
        %v457 = vadd.f32 %v417, %v441
        %v458 = vadd.f32 %v418, %v442
        %v459 = vadd.f32 %v419, %v443
        %v460 = vadd.f32 %v420, %v444
        %v461 = vadd.f32 %v421, %v445
        %v462 = vadd.f32 %v422, %v446
        %v463 = vadd.f32 %v423, %v447
        %v464 = vadd.f32 %v424, %v448
        %v465 = vadd.f32 %v425, %v449
        %v466 = vadd.f32 %v426, %v450
        %v467 = vadd.f32 %v427, %v451
        %s468 = scalar_lea.vmem %s2, 1
        %v469 = vld [vmem:[%s468] sm:$0x1]
        %v471 = vlaneseq
        %v472 = vshrl.u32 %v471, 7
        %v473 = vsub.s32 0, %v472
        %v474 = vrot.slane %v469, %v473
        %v476 = vmul.f32 %v335, %v474
        %v477 = vmul.f32 %v336, %v474
        %v478 = vmul.f32 %v337, %v474
        %v479 = vmul.f32 %v338, %v474
        %v480 = vmul.f32 %v339, %v474
        %v481 = vmul.f32 %v340, %v474
        %v482 = vmul.f32 %v341, %v474
        %v483 = vmul.f32 %v342, %v474
        %v484 = vmul.f32 %v343, %v474
        %v485 = vmul.f32 %v344, %v474
        %v486 = vmul.f32 %v345, %v474
        %v487 = vmul.f32 %v346, %v474
        %v488 = vmul.f32 %v347, %v474
        %v489 = vmul.f32 %v348, %v474
        %v490 = vmul.f32 %v349, %v474
        %v491 = vmul.f32 %v350, %v474
        %v492 = vmul.f32 %v351, %v474
        %v493 = vmul.f32 %v352, %v474
        %v494 = vmul.f32 %v353, %v474
        %v495 = vmul.f32 %v354, %v474
        %v496 = vmul.f32 %v355, %v474
        %v497 = vmul.f32 %v356, %v474
        %v498 = vmul.f32 %v357, %v474
        %v499 = vmul.f32 %v358, %v474
        %vm524 = vcmask 1046528
        %v525 = vrot.slane %v476, 1
        %v526 = vrot.slane %v477, 1
        %v527 = vsel %vm524, %v525, %v526
        %v528 = vrot.slane %v478, 1
        %v529 = vsel %vm524, %v526, %v528
        %v530 = vrot.slane %v479, 1
        %v531 = vrot.slane %v480, 1
        %v532 = vsel %vm524, %v530, %v531
        %v533 = vrot.slane %v481, 1
        %v534 = vsel %vm524, %v531, %v533
        %v535 = vrot.slane %v482, 1
        %v536 = vrot.slane %v483, 1
        %v537 = vsel %vm524, %v535, %v536
        %v538 = vrot.slane %v484, 1
        %v539 = vsel %vm524, %v536, %v538
        %v540 = vrot.slane %v485, 1
        %v541 = vrot.slane %v486, 1
        %v542 = vsel %vm524, %v540, %v541
        %v543 = vrot.slane %v487, 1
        %v544 = vsel %vm524, %v541, %v543
        %v545 = vrot.slane %v488, 1
        %v546 = vrot.slane %v489, 1
        %v547 = vsel %vm524, %v545, %v546
        %v548 = vrot.slane %v490, 1
        %v549 = vsel %vm524, %v546, %v548
        %v550 = vrot.slane %v491, 1
        %v551 = vrot.slane %v492, 1
        %v552 = vsel %vm524, %v550, %v551
        %v553 = vrot.slane %v493, 1
        %v554 = vsel %vm524, %v551, %v553
        %v555 = vrot.slane %v494, 1
        %v556 = vrot.slane %v495, 1
        %v557 = vsel %vm524, %v555, %v556
        %v558 = vrot.slane %v496, 1
        %v559 = vsel %vm524, %v556, %v558
        %v560 = vrot.slane %v497, 1
        %v561 = vrot.slane %v498, 1
        %v562 = vsel %vm524, %v560, %v561
        %v563 = vrot.slane %v499, 1
        %v564 = vsel %vm524, %v561, %v563
        %v581 = vadd.f32 %v452, %v527
        %v582 = vadd.f32 %v453, %v529
        %v583 = vadd.f32 %v454, %v532
        %v584 = vadd.f32 %v455, %v534
        %v585 = vadd.f32 %v456, %v537
        %v586 = vadd.f32 %v457, %v539
        %v587 = vadd.f32 %v458, %v542
        %v588 = vadd.f32 %v459, %v544
        %v589 = vadd.f32 %v460, %v547
        %v590 = vadd.f32 %v461, %v549
        %v591 = vadd.f32 %v462, %v552
        %v592 = vadd.f32 %v463, %v554
        %v593 = vadd.f32 %v464, %v557
        %v594 = vadd.f32 %v465, %v559
        %v595 = vadd.f32 %v466, %v562
        %v596 = vadd.f32 %v467, %v564
        %s597 = scalar_lea.vmem %s2, 4
        %v598 = vld [vmem:[%s597] sm:$0x1]
        %v600 = vlaneseq
        %v601 = vshrl.u32 %v600, 7
        %v602 = vsub.s32 0, %v601
        %v603 = vrot.slane %v598, %v602
        %v605 = vmul.f32 %v338, %v603
        %v606 = vmul.f32 %v339, %v603
        %v607 = vmul.f32 %v340, %v603
        %v608 = vmul.f32 %v341, %v603
        %v609 = vmul.f32 %v342, %v603
        %v610 = vmul.f32 %v343, %v603
        %v611 = vmul.f32 %v344, %v603
        %v612 = vmul.f32 %v345, %v603
        %v613 = vmul.f32 %v346, %v603
        %v614 = vmul.f32 %v347, %v603
        %v615 = vmul.f32 %v348, %v603
        %v616 = vmul.f32 %v349, %v603
        %v617 = vmul.f32 %v350, %v603
        %v618 = vmul.f32 %v351, %v603
        %v619 = vmul.f32 %v352, %v603
        %v620 = vmul.f32 %v353, %v603
        %v621 = vmul.f32 %v354, %v603
        %v622 = vmul.f32 %v355, %v603
        %v623 = vmul.f32 %v356, %v603
        %v624 = vmul.f32 %v357, %v603
        %v625 = vmul.f32 %v358, %v603
        %v626 = vmul.f32 %v359, %v603
        %v627 = vmul.f32 %v360, %v603
        %v628 = vmul.f32 %v361, %v603
        %v653 = vrot.slane %v605, 1
        %v654 = vrot.slane %v606, 1
        %v655 = vsel %vm524, %v653, %v654
        %v656 = vrot.slane %v607, 1
        %v657 = vsel %vm524, %v654, %v656
        %v658 = vrot.slane %v608, 1
        %v659 = vrot.slane %v609, 1
        %v660 = vsel %vm524, %v658, %v659
        %v661 = vrot.slane %v610, 1
        %v662 = vsel %vm524, %v659, %v661
        %v663 = vrot.slane %v611, 1
        %v664 = vrot.slane %v612, 1
        %v665 = vsel %vm524, %v663, %v664
        %v666 = vrot.slane %v613, 1
        %v667 = vsel %vm524, %v664, %v666
        %v668 = vrot.slane %v614, 1
        %v669 = vrot.slane %v615, 1
        %v670 = vsel %vm524, %v668, %v669
        %v671 = vrot.slane %v616, 1
        %v672 = vsel %vm524, %v669, %v671
        %v673 = vrot.slane %v617, 1
        %v674 = vrot.slane %v618, 1
        %v675 = vsel %vm524, %v673, %v674
        %v676 = vrot.slane %v619, 1
        %v677 = vsel %vm524, %v674, %v676
        %v678 = vrot.slane %v620, 1
        %v679 = vrot.slane %v621, 1
        %v680 = vsel %vm524, %v678, %v679
        %v681 = vrot.slane %v622, 1
        %v682 = vsel %vm524, %v679, %v681
        %v683 = vrot.slane %v623, 1
        %v684 = vrot.slane %v624, 1
        %v685 = vsel %vm524, %v683, %v684
        %v686 = vrot.slane %v625, 1
        %v687 = vsel %vm524, %v684, %v686
        %v688 = vrot.slane %v626, 1
        %v689 = vrot.slane %v627, 1
        %v690 = vsel %vm524, %v688, %v689
        %v691 = vrot.slane %v628, 1
        %v692 = vsel %vm524, %v689, %v691
        %v709 = vadd.f32 %v581, %v655
        %v710 = vadd.f32 %v582, %v657
        %v711 = vadd.f32 %v583, %v660
        %v712 = vadd.f32 %v584, %v662
        %v713 = vadd.f32 %v585, %v665
        %v714 = vadd.f32 %v586, %v667
        %v715 = vadd.f32 %v587, %v670
        %v716 = vadd.f32 %v588, %v672
        %v717 = vadd.f32 %v589, %v675
        %v718 = vadd.f32 %v590, %v677
        %v719 = vadd.f32 %v591, %v680
        %v720 = vadd.f32 %v592, %v682
        %v721 = vadd.f32 %v593, %v685
        %v722 = vadd.f32 %v594, %v687
        %v723 = vadd.f32 %v595, %v690
        %v724 = vadd.f32 %v596, %v692
        %s725 = scalar_lea.vmem %s2, 7
        %v726 = vld [vmem:[%s725] sm:$0x1]
        %v728 = vlaneseq
        %v729 = vshrl.u32 %v728, 7
        %v730 = vsub.s32 0, %v729
        %v731 = vrot.slane %v726, %v730
        %v733 = vmul.f32 %v341, %v731
        %v734 = vmul.f32 %v342, %v731
        %v735 = vmul.f32 %v343, %v731
        %v736 = vmul.f32 %v344, %v731
        %v737 = vmul.f32 %v345, %v731
        %v738 = vmul.f32 %v346, %v731
        %v739 = vmul.f32 %v347, %v731
        %v740 = vmul.f32 %v348, %v731
        %v741 = vmul.f32 %v349, %v731
        %v742 = vmul.f32 %v350, %v731
        %v743 = vmul.f32 %v351, %v731
        %v744 = vmul.f32 %v352, %v731
        %v745 = vmul.f32 %v353, %v731
        %v746 = vmul.f32 %v354, %v731
        %v747 = vmul.f32 %v355, %v731
        %v748 = vmul.f32 %v356, %v731
        %v749 = vmul.f32 %v357, %v731
        %v750 = vmul.f32 %v358, %v731
        %v751 = vmul.f32 %v359, %v731
        %v752 = vmul.f32 %v360, %v731
        %v753 = vmul.f32 %v361, %v731
        %v754 = vmul.f32 %v362, %v731
        %v755 = vmul.f32 %v363, %v731
        %v756 = vmul.f32 %v364, %v731
        %v781 = vrot.slane %v733, 1
        %v782 = vrot.slane %v734, 1
        %v783 = vsel %vm524, %v781, %v782
        %v784 = vrot.slane %v735, 1
        %v785 = vsel %vm524, %v782, %v784
        %v786 = vrot.slane %v736, 1
        %v787 = vrot.slane %v737, 1
        %v788 = vsel %vm524, %v786, %v787
        %v789 = vrot.slane %v738, 1
        %v790 = vsel %vm524, %v787, %v789
        %v791 = vrot.slane %v739, 1
        %v792 = vrot.slane %v740, 1
        %v793 = vsel %vm524, %v791, %v792
        %v794 = vrot.slane %v741, 1
        %v795 = vsel %vm524, %v792, %v794
        %v796 = vrot.slane %v742, 1
        %v797 = vrot.slane %v743, 1
        %v798 = vsel %vm524, %v796, %v797
        %v799 = vrot.slane %v744, 1
        %v800 = vsel %vm524, %v797, %v799
        %v801 = vrot.slane %v745, 1
        %v802 = vrot.slane %v746, 1
        %v803 = vsel %vm524, %v801, %v802
        %v804 = vrot.slane %v747, 1
        %v805 = vsel %vm524, %v802, %v804
        %v806 = vrot.slane %v748, 1
        %v807 = vrot.slane %v749, 1
        %v808 = vsel %vm524, %v806, %v807
        %v809 = vrot.slane %v750, 1
        %v810 = vsel %vm524, %v807, %v809
        %v811 = vrot.slane %v751, 1
        %v812 = vrot.slane %v752, 1
        %v813 = vsel %vm524, %v811, %v812
        %v814 = vrot.slane %v753, 1
        %v815 = vsel %vm524, %v812, %v814
        %v816 = vrot.slane %v754, 1
        %v817 = vrot.slane %v755, 1
        %v818 = vsel %vm524, %v816, %v817
        %v819 = vrot.slane %v756, 1
        %v820 = vsel %vm524, %v817, %v819
        %v837 = vadd.f32 %v709, %v783
        %v838 = vadd.f32 %v710, %v785
        %v839 = vadd.f32 %v711, %v788
        %v840 = vadd.f32 %v712, %v790
        %v841 = vadd.f32 %v713, %v793
        %v842 = vadd.f32 %v714, %v795
        %v843 = vadd.f32 %v715, %v798
        %v844 = vadd.f32 %v716, %v800
        %v845 = vadd.f32 %v717, %v803
        %v846 = vadd.f32 %v718, %v805
        %v847 = vadd.f32 %v719, %v808
        %v848 = vadd.f32 %v720, %v810
        %v849 = vadd.f32 %v721, %v813
        %v850 = vadd.f32 %v722, %v815
        %v851 = vadd.f32 %v723, %v818
        %v852 = vadd.f32 %v724, %v820
        %s853 = scalar_lea.vmem %s2, 2
        %v854 = vld [vmem:[%s853] sm:$0x1]
        %v856 = vlaneseq
        %v857 = vshrl.u32 %v856, 7
        %v858 = vsub.s32 0, %v857
        %v859 = vrot.slane %v854, %v858
        %v861 = vmul.f32 %v335, %v859
        %v862 = vmul.f32 %v336, %v859
        %v863 = vmul.f32 %v337, %v859
        %v864 = vmul.f32 %v338, %v859
        %v865 = vmul.f32 %v339, %v859
        %v866 = vmul.f32 %v340, %v859
        %v867 = vmul.f32 %v341, %v859
        %v868 = vmul.f32 %v342, %v859
        %v869 = vmul.f32 %v343, %v859
        %v870 = vmul.f32 %v344, %v859
        %v871 = vmul.f32 %v345, %v859
        %v872 = vmul.f32 %v346, %v859
        %v873 = vmul.f32 %v347, %v859
        %v874 = vmul.f32 %v348, %v859
        %v875 = vmul.f32 %v349, %v859
        %v876 = vmul.f32 %v350, %v859
        %v877 = vmul.f32 %v351, %v859
        %v878 = vmul.f32 %v352, %v859
        %v879 = vmul.f32 %v353, %v859
        %v880 = vmul.f32 %v354, %v859
        %v881 = vmul.f32 %v355, %v859
        %v882 = vmul.f32 %v356, %v859
        %v883 = vmul.f32 %v357, %v859
        %v884 = vmul.f32 %v358, %v859
        %vm909 = vcmask 1045504
        %v910 = vrot.slane %v861, 2
        %v911 = vrot.slane %v862, 2
        %v912 = vsel %vm909, %v910, %v911
        %v913 = vrot.slane %v863, 2
        %v914 = vsel %vm909, %v911, %v913
        %v915 = vrot.slane %v864, 2
        %v916 = vrot.slane %v865, 2
        %v917 = vsel %vm909, %v915, %v916
        %v918 = vrot.slane %v866, 2
        %v919 = vsel %vm909, %v916, %v918
        %v920 = vrot.slane %v867, 2
        %v921 = vrot.slane %v868, 2
        %v922 = vsel %vm909, %v920, %v921
        %v923 = vrot.slane %v869, 2
        %v924 = vsel %vm909, %v921, %v923
        %v925 = vrot.slane %v870, 2
        %v926 = vrot.slane %v871, 2
        %v927 = vsel %vm909, %v925, %v926
        %v928 = vrot.slane %v872, 2
        %v929 = vsel %vm909, %v926, %v928
        %v930 = vrot.slane %v873, 2
        %v931 = vrot.slane %v874, 2
        %v932 = vsel %vm909, %v930, %v931
        %v933 = vrot.slane %v875, 2
        %v934 = vsel %vm909, %v931, %v933
        %v935 = vrot.slane %v876, 2
        %v936 = vrot.slane %v877, 2
        %v937 = vsel %vm909, %v935, %v936
        %v938 = vrot.slane %v878, 2
        %v939 = vsel %vm909, %v936, %v938
        %v940 = vrot.slane %v879, 2
        %v941 = vrot.slane %v880, 2
        %v942 = vsel %vm909, %v940, %v941
        %v943 = vrot.slane %v881, 2
        %v944 = vsel %vm909, %v941, %v943
        %v945 = vrot.slane %v882, 2
        %v946 = vrot.slane %v883, 2
        %v947 = vsel %vm909, %v945, %v946
        %v948 = vrot.slane %v884, 2
        %v949 = vsel %vm909, %v946, %v948
        %v966 = vadd.f32 %v837, %v912
        %v967 = vadd.f32 %v838, %v914
        %v968 = vadd.f32 %v839, %v917
        %v969 = vadd.f32 %v840, %v919
        %v970 = vadd.f32 %v841, %v922
        %v971 = vadd.f32 %v842, %v924
        %v972 = vadd.f32 %v843, %v927
        %v973 = vadd.f32 %v844, %v929
        %v974 = vadd.f32 %v845, %v932
        %v975 = vadd.f32 %v846, %v934
        %v976 = vadd.f32 %v847, %v937
        %v977 = vadd.f32 %v848, %v939
        %v978 = vadd.f32 %v849, %v942
        %v979 = vadd.f32 %v850, %v944
        %v980 = vadd.f32 %v851, %v947
        %v981 = vadd.f32 %v852, %v949
        %s982 = scalar_lea.vmem %s2, 5
        %v983 = vld [vmem:[%s982] sm:$0x1]
        %v985 = vlaneseq
        %v986 = vshrl.u32 %v985, 7
        %v987 = vsub.s32 0, %v986
        %v988 = vrot.slane %v983, %v987
        %v990 = vmul.f32 %v338, %v988
        %v991 = vmul.f32 %v339, %v988
        %v992 = vmul.f32 %v340, %v988
        %v993 = vmul.f32 %v341, %v988
        %v994 = vmul.f32 %v342, %v988
        %v995 = vmul.f32 %v343, %v988
        %v996 = vmul.f32 %v344, %v988
        %v997 = vmul.f32 %v345, %v988
        %v998 = vmul.f32 %v346, %v988
        %v999 = vmul.f32 %v347, %v988
        %v1000 = vmul.f32 %v348, %v988
        %v1001 = vmul.f32 %v349, %v988
        %v1002 = vmul.f32 %v350, %v988
        %v1003 = vmul.f32 %v351, %v988
        %v1004 = vmul.f32 %v352, %v988
        %v1005 = vmul.f32 %v353, %v988
        %v1006 = vmul.f32 %v354, %v988
        %v1007 = vmul.f32 %v355, %v988
        %v1008 = vmul.f32 %v356, %v988
        %v1009 = vmul.f32 %v357, %v988
        %v1010 = vmul.f32 %v358, %v988
        %v1011 = vmul.f32 %v359, %v988
        %v1012 = vmul.f32 %v360, %v988
        %v1013 = vmul.f32 %v361, %v988
        %v1038 = vrot.slane %v990, 2
        %v1039 = vrot.slane %v991, 2
        %v1040 = vsel %vm909, %v1038, %v1039
        %v1041 = vrot.slane %v992, 2
        %v1042 = vsel %vm909, %v1039, %v1041
        %v1043 = vrot.slane %v993, 2
        %v1044 = vrot.slane %v994, 2
        %v1045 = vsel %vm909, %v1043, %v1044
        %v1046 = vrot.slane %v995, 2
        %v1047 = vsel %vm909, %v1044, %v1046
        %v1048 = vrot.slane %v996, 2
        %v1049 = vrot.slane %v997, 2
        %v1050 = vsel %vm909, %v1048, %v1049
        %v1051 = vrot.slane %v998, 2
        %v1052 = vsel %vm909, %v1049, %v1051
        %v1053 = vrot.slane %v999, 2
        %v1054 = vrot.slane %v1000, 2
        %v1055 = vsel %vm909, %v1053, %v1054
        %v1056 = vrot.slane %v1001, 2
        %v1057 = vsel %vm909, %v1054, %v1056
        %v1058 = vrot.slane %v1002, 2
        %v1059 = vrot.slane %v1003, 2
        %v1060 = vsel %vm909, %v1058, %v1059
        %v1061 = vrot.slane %v1004, 2
        %v1062 = vsel %vm909, %v1059, %v1061
        %v1063 = vrot.slane %v1005, 2
        %v1064 = vrot.slane %v1006, 2
        %v1065 = vsel %vm909, %v1063, %v1064
        %v1066 = vrot.slane %v1007, 2
        %v1067 = vsel %vm909, %v1064, %v1066
        %v1068 = vrot.slane %v1008, 2
        %v1069 = vrot.slane %v1009, 2
        %v1070 = vsel %vm909, %v1068, %v1069
        %v1071 = vrot.slane %v1010, 2
        %v1072 = vsel %vm909, %v1069, %v1071
        %v1073 = vrot.slane %v1011, 2
        %v1074 = vrot.slane %v1012, 2
        %v1075 = vsel %vm909, %v1073, %v1074
        %v1076 = vrot.slane %v1013, 2
        %v1077 = vsel %vm909, %v1074, %v1076
        %v1094 = vadd.f32 %v966, %v1040
        %v1095 = vadd.f32 %v967, %v1042
        %v1096 = vadd.f32 %v968, %v1045
        %v1097 = vadd.f32 %v969, %v1047
        %v1098 = vadd.f32 %v970, %v1050
        %v1099 = vadd.f32 %v971, %v1052
        %v1100 = vadd.f32 %v972, %v1055
        %v1101 = vadd.f32 %v973, %v1057
        %v1102 = vadd.f32 %v974, %v1060
        %v1103 = vadd.f32 %v975, %v1062
        %v1104 = vadd.f32 %v976, %v1065
        %v1105 = vadd.f32 %v977, %v1067
        %v1106 = vadd.f32 %v978, %v1070
        %v1107 = vadd.f32 %v979, %v1072
        %v1108 = vadd.f32 %v980, %v1075
        %v1109 = vadd.f32 %v981, %v1077
        %s1110 = scalar_lea.vmem %s2, 8
        %v1111 = vld [vmem:[%s1110] sm:$0x1]
        %v1113 = vlaneseq
        %v1114 = vshrl.u32 %v1113, 7
        %v1115 = vsub.s32 0, %v1114
        %v1116 = vrot.slane %v1111, %v1115
        %v1118 = vmul.f32 %v341, %v1116
        %v1119 = vmul.f32 %v342, %v1116
        %v1120 = vmul.f32 %v343, %v1116
        %v1121 = vmul.f32 %v344, %v1116
        %v1122 = vmul.f32 %v345, %v1116
        %v1123 = vmul.f32 %v346, %v1116
        %v1124 = vmul.f32 %v347, %v1116
        %v1125 = vmul.f32 %v348, %v1116
        %v1126 = vmul.f32 %v349, %v1116
        %v1127 = vmul.f32 %v350, %v1116
        %v1128 = vmul.f32 %v351, %v1116
        %v1129 = vmul.f32 %v352, %v1116
        %v1130 = vmul.f32 %v353, %v1116
        %v1131 = vmul.f32 %v354, %v1116
        %v1132 = vmul.f32 %v355, %v1116
        %v1133 = vmul.f32 %v356, %v1116
        %v1134 = vmul.f32 %v357, %v1116
        %v1135 = vmul.f32 %v358, %v1116
        %v1136 = vmul.f32 %v359, %v1116
        %v1137 = vmul.f32 %v360, %v1116
        %v1138 = vmul.f32 %v361, %v1116
        %v1139 = vmul.f32 %v362, %v1116
        %v1140 = vmul.f32 %v363, %v1116
        %v1141 = vmul.f32 %v364, %v1116
        %v1166 = vrot.slane %v1118, 2
        %v1167 = vrot.slane %v1119, 2
        %v1168 = vsel %vm909, %v1166, %v1167
        %v1169 = vrot.slane %v1120, 2
        %v1170 = vsel %vm909, %v1167, %v1169
        %v1171 = vrot.slane %v1121, 2
        %v1172 = vrot.slane %v1122, 2
        %v1173 = vsel %vm909, %v1171, %v1172
        %v1174 = vrot.slane %v1123, 2
        %v1175 = vsel %vm909, %v1172, %v1174
        %v1176 = vrot.slane %v1124, 2
        %v1177 = vrot.slane %v1125, 2
        %v1178 = vsel %vm909, %v1176, %v1177
        %v1179 = vrot.slane %v1126, 2
        %v1180 = vsel %vm909, %v1177, %v1179
        %v1181 = vrot.slane %v1127, 2
        %v1182 = vrot.slane %v1128, 2
        %v1183 = vsel %vm909, %v1181, %v1182
        %v1184 = vrot.slane %v1129, 2
        %v1185 = vsel %vm909, %v1182, %v1184
        %v1186 = vrot.slane %v1130, 2
        %v1187 = vrot.slane %v1131, 2
        %v1188 = vsel %vm909, %v1186, %v1187
        %v1189 = vrot.slane %v1132, 2
        %v1190 = vsel %vm909, %v1187, %v1189
        %v1191 = vrot.slane %v1133, 2
        %v1192 = vrot.slane %v1134, 2
        %v1193 = vsel %vm909, %v1191, %v1192
        %v1194 = vrot.slane %v1135, 2
        %v1195 = vsel %vm909, %v1192, %v1194
        %v1196 = vrot.slane %v1136, 2
        %v1197 = vrot.slane %v1137, 2
        %v1198 = vsel %vm909, %v1196, %v1197
        %v1199 = vrot.slane %v1138, 2
        %v1200 = vsel %vm909, %v1197, %v1199
        %v1201 = vrot.slane %v1139, 2
        %v1202 = vrot.slane %v1140, 2
        %v1203 = vsel %vm909, %v1201, %v1202
        %v1204 = vrot.slane %v1141, 2
        %v1205 = vsel %vm909, %v1202, %v1204
        %v1222 = vadd.f32 %v1094, %v1168
        %v1223 = vadd.f32 %v1095, %v1170
        %v1224 = vadd.f32 %v1096, %v1173
        %v1225 = vadd.f32 %v1097, %v1175
        %v1226 = vadd.f32 %v1098, %v1178
        %v1227 = vadd.f32 %v1099, %v1180
        %v1228 = vadd.f32 %v1100, %v1183
        %v1229 = vadd.f32 %v1101, %v1185
        %v1230 = vadd.f32 %v1102, %v1188
        %v1231 = vadd.f32 %v1103, %v1190
        %v1232 = vadd.f32 %v1104, %v1193
        %v1233 = vadd.f32 %v1105, %v1195
        %v1234 = vadd.f32 %v1106, %v1198
        %v1235 = vadd.f32 %v1107, %v1200
        %v1236 = vadd.f32 %v1108, %v1203
        %v1237 = vadd.f32 %v1109, %v1205
        %v1238 = vld [vmem:[%s3] sm:$0xf]
        %v1239 = vld [vmem:[%s4] sm:$0x1]
        %v1241 = vlaneseq
        %v1242 = vshrl.u32 %v1241, 7
        %v1243 = vsub.s32 0, %v1242
        %v1244 = vrot.slane %v1239, %v1243
        %vm1246 = vcmask 31744
        %v1248 = vsel %vm1246, %v1222, 0
        %v1251 = vsel %vm1246, %v1223, 0
        %v1254 = vsel %vm1246, %v1224, 0
        %v1257 = vsel %vm1246, %v1225, 0
        %v1260 = vsel %vm1246, %v1226, 0
        %v1263 = vsel %vm1246, %v1227, 0
        %v1266 = vsel %vm1246, %v1228, 0
        %v1269 = vsel %vm1246, %v1229, 0
        %v1272 = vsel %vm1246, %v1230, 0
        %v1275 = vsel %vm1246, %v1231, 0
        %v1278 = vsel %vm1246, %v1232, 0
        %v1281 = vsel %vm1246, %v1233, 0
        %v1284 = vsel %vm1246, %v1234, 0
        %v1287 = vsel %vm1246, %v1235, 0
        %v1290 = vsel %vm1246, %v1236, 0
        %v1293 = vsel %vm1246, %v1237, 0
        %vm1295 = vcmask 1043456
        %v1297 = vsel %vm1295, %v1238, 0
        %1299 = vmatprep.subr.mxu0 0.0
        %1300 = vmatpush1.msra.mxu0 0.0
        %1301 = vmatprep.subr.mxu0 0.0
        %1302 = vmatpush1.msra.mxu0 0.0
        %1303 = vmatprep.subr.mxu0 0.0
        %1304 = vmatpush1.msra.mxu0 0.0
        %1305 = vmatprep.subr.mxu0 0.0
        %1306 = vmatpush1.msra.mxu0 0.0
        %1307 = vmatprep.subr.mxu0 0.0
        %1308 = vmatpush1.msra.mxu0 0.0
        %1309 = vmatprep.subr.mxu0 0.0
        %1310 = vmatpush1.msra.mxu0 0.0
        %1311 = vmatprep.subr.mxu0 0.0
        %1312 = vmatpush1.msra.mxu0 0.0
        %1313 = vmatprep.subr.mxu0 0.0
        %1314 = vmatpush1.msra.mxu0 0.0
        %1315 = vmatprep.subr.mxu0 0.0
        %1316 = vmatpush1.msra.mxu0 0.0
        %1317 = vmatprep.subr.mxu0 0.0
        %1318 = vmatpush1.msra.mxu0 0.0
        %1319 = vmatprep.subr.mxu0 0.0
        %1320 = vmatpush1.msra.mxu0 0.0
        %1321 = vmatprep.subr.mxu0 0.0
        %1322 = vmatpush1.msra.mxu0 0.0
        %1323 = vmatprep.subr.mxu0 0.0
        %1324 = vmatpush1.msra.mxu0 0.0
        %1325 = vmatprep.subr.mxu0 0.0
        %1326 = vmatpush1.msra.mxu0 0.0
        %1327 = vmatprep.subr.mxu0 0.0
        %1328 = vmatpush1.msra.mxu0 0.0
        %1329 = vmatprep.subr.mxu0 0.0
        %1330 = vmatpush1.msra.mxu0 %v1297
        %1331 = vmatprep.subr.mxu0 0.0
        %1332 = vmatpush2.msra.mxu0 0.0
        %1333 = vmatprep.subr.mxu0 0.0
        %1334 = vmatpush2.msra.mxu0 0.0
        %1335 = vmatprep.subr.mxu0 0.0
        %1336 = vmatpush2.msra.mxu0 0.0
        %1337 = vmatprep.subr.mxu0 0.0
        %1338 = vmatpush2.msra.mxu0 0.0
        %1339 = vmatprep.subr.mxu0 0.0
        %1340 = vmatpush2.msra.mxu0 0.0
        %1341 = vmatprep.subr.mxu0 0.0
        %1342 = vmatpush2.msra.mxu0 0.0
        %1343 = vmatprep.subr.mxu0 0.0
        %1344 = vmatpush2.msra.mxu0 0.0
        %1345 = vmatprep.subr.mxu0 0.0
        %1346 = vmatpush2.msra.mxu0 0.0
        %1347 = vmatprep.subr.mxu0 0.0
        %1348 = vmatpush2.msra.mxu0 0.0
        %1349 = vmatprep.subr.mxu0 0.0
        %1350 = vmatpush2.msra.mxu0 0.0
        %1351 = vmatprep.subr.mxu0 0.0
        %1352 = vmatpush2.msra.mxu0 0.0
        %1353 = vmatprep.subr.mxu0 0.0
        %1354 = vmatpush2.msra.mxu0 0.0
        %1355 = vmatprep.subr.mxu0 0.0
        %1356 = vmatpush2.msra.mxu0 0.0
        %1357 = vmatprep.subr.mxu0 0.0
        %1358 = vmatpush2.msra.mxu0 0.0
        %1359 = vmatprep.subr.mxu0 0.0
        %1360 = vmatpush2.msra.mxu0 0.0
        %1361 = vmatprep.subr.mxu0 0.0
        %1362 = vmatpush2.msra.mxu0 0.0
        %1363 = vmatprep.mubr.f32.mxu0 0.0
        %1364 = vmatmul.mubr.f32.gmra.mxu0 %v1248
        %v1365 = vpop.f32.mrf.mxu0
        %v1366 = vadd.f32 %v1244, %v1365
        %v1367 = vpop.f32.mrf.mxu0
        %1368 = vmatprep.mubr.f32.mxu0 0.0
        %1369 = vmatmul.mubr.f32.gmra.mxu0 %v1251
        %v1370 = vpop.f32.mrf.mxu0
        %v1371 = vadd.f32 %v1244, %v1370
        %v1372 = vpop.f32.mrf.mxu0
        %1373 = vmatprep.mubr.f32.mxu0 0.0
        %1374 = vmatmul.mubr.f32.gmra.mxu0 %v1254
        %v1375 = vpop.f32.mrf.mxu0
        %v1376 = vadd.f32 %v1244, %v1375
        %v1377 = vpop.f32.mrf.mxu0
        %1378 = vmatprep.mubr.f32.mxu0 0.0
        %1379 = vmatmul.mubr.f32.gmra.mxu0 %v1257
        %v1380 = vpop.f32.mrf.mxu0
        %v1381 = vadd.f32 %v1244, %v1380
        %v1382 = vpop.f32.mrf.mxu0
        %1383 = vmatprep.mubr.f32.mxu0 0.0
        %1384 = vmatmul.mubr.f32.gmra.mxu0 %v1260
        %v1385 = vpop.f32.mrf.mxu0
        %v1386 = vadd.f32 %v1244, %v1385
        %v1387 = vpop.f32.mrf.mxu0
        %1388 = vmatprep.mubr.f32.mxu0 0.0
        %1389 = vmatmul.mubr.f32.gmra.mxu0 %v1263
        %v1390 = vpop.f32.mrf.mxu0
        %v1391 = vadd.f32 %v1244, %v1390
        %v1392 = vpop.f32.mrf.mxu0
        %1393 = vmatprep.mubr.f32.mxu0 0.0
        %1394 = vmatmul.mubr.f32.gmra.mxu0 %v1266
        %v1395 = vpop.f32.mrf.mxu0
        %v1396 = vadd.f32 %v1244, %v1395
        %v1397 = vpop.f32.mrf.mxu0
        %1398 = vmatprep.mubr.f32.mxu0 0.0
        %1399 = vmatmul.mubr.f32.gmra.mxu0 %v1269
        %v1400 = vpop.f32.mrf.mxu0
        %v1401 = vadd.f32 %v1244, %v1400
        %v1402 = vpop.f32.mrf.mxu0
        %1403 = vmatprep.mubr.f32.mxu0 0.0
        %1404 = vmatmul.mubr.f32.gmra.mxu0 %v1272
        %v1405 = vpop.f32.mrf.mxu0
        %v1406 = vadd.f32 %v1244, %v1405
        %v1407 = vpop.f32.mrf.mxu0
        %1408 = vmatprep.mubr.f32.mxu0 0.0
        %1409 = vmatmul.mubr.f32.gmra.mxu0 %v1275
        %v1410 = vpop.f32.mrf.mxu0
        %v1411 = vadd.f32 %v1244, %v1410
        %v1412 = vpop.f32.mrf.mxu0
        %1413 = vmatprep.mubr.f32.mxu0 0.0
        %1414 = vmatmul.mubr.f32.gmra.mxu0 %v1278
        %v1415 = vpop.f32.mrf.mxu0
        %v1416 = vadd.f32 %v1244, %v1415
        %v1417 = vpop.f32.mrf.mxu0
        %1418 = vmatprep.mubr.f32.mxu0 0.0
        %1419 = vmatmul.mubr.f32.gmra.mxu0 %v1281
        %v1420 = vpop.f32.mrf.mxu0
        %v1421 = vadd.f32 %v1244, %v1420
        %v1422 = vpop.f32.mrf.mxu0
        %1423 = vmatprep.mubr.f32.mxu0 0.0
        %1424 = vmatmul.mubr.f32.gmra.mxu0 %v1284
        %v1425 = vpop.f32.mrf.mxu0
        %v1426 = vadd.f32 %v1244, %v1425
        %v1427 = vpop.f32.mrf.mxu0
        %1428 = vmatprep.mubr.f32.mxu0 0.0
        %1429 = vmatmul.mubr.f32.gmra.mxu0 %v1287
        %v1430 = vpop.f32.mrf.mxu0
        %v1431 = vadd.f32 %v1244, %v1430
        %v1432 = vpop.f32.mrf.mxu0
        %1433 = vmatprep.mubr.f32.mxu0 0.0
        %1434 = vmatmul.mubr.f32.gmra.mxu0 %v1290
        %v1435 = vpop.f32.mrf.mxu0
        %v1436 = vadd.f32 %v1244, %v1435
        %v1437 = vpop.f32.mrf.mxu0
        %1438 = vmatprep.mubr.f32.mxu0 0.0
        %1439 = vmatmul.mubr.f32.gmra.mxu0 %v1293
        %v1440 = vpop.f32.mrf.mxu0
        %v1441 = vadd.f32 %v1244, %v1440
        %v1442 = vpop.f32.mrf.mxu0
        %1443 = vdwg.mxu0
        %1444 = vst [vmem:[%s297] sm:$0xff] %v1366
        %1445 = vst [vmem:[%s297 + $0x8] sm:$0xff] %v1371
        %1446 = vst [vmem:[%s297 + $0x10] sm:$0xff] %v1376
        %1447 = vst [vmem:[%s297 + $0x18] sm:$0xff] %v1381
        %1448 = vst [vmem:[%s297 + $0x20] sm:$0xff] %v1386
        %1449 = vst [vmem:[%s297 + $0x28] sm:$0xff] %v1391
        %1450 = vst [vmem:[%s297 + $0x30] sm:$0xff] %v1396
        %1451 = vst [vmem:[%s297 + $0x38] sm:$0xff] %v1401
        %1452 = vst [vmem:[%s297 + $0x40] sm:$0xff] %v1406
        %1453 = vst [vmem:[%s297 + $0x48] sm:$0xff] %v1411
        %1454 = vst [vmem:[%s297 + $0x50] sm:$0xff] %v1416
        %1455 = vst [vmem:[%s297 + $0x58] sm:$0xff] %v1421
        %1456 = vst [vmem:[%s297 + $0x60] sm:$0xff] %v1426
        %1457 = vst [vmem:[%s297 + $0x68] sm:$0xff] %v1431
        %1458 = vst [vmem:[%s297 + $0x70] sm:$0xff] %v1436
        %1459 = vst [vmem:[%s297 + $0x78] sm:$0xff] %v1441
        %s1460 = sand.u32 %s164, 1
        %s1461 = scalar_lea.sflag [#allocation3], %s1460
        %s1462 = sand.u32 %s164, 1
        %s1463 = smul.addr %s1462, 128
        %s1464 = scalar_lea.vmem [#allocation2], %s1463
        // Predicated region
        $region41: #{tpu_custom_call.1} parent=39 // pred_check
          %p1465 = pneg %p174
        $region42: #{tpu_custom_call.1} parent=39 // pred_check_branch
          %1467 = sbr.rel (%p1465) target = $region44
        $region43: #{tpu_custom_call.1} parent=39 // pred_region
          %s1468 = smul.u32 8, %s24
          %s1470 = ssub.s32 2048, 2048
          %1471 = vsyncadd %s1461, %s1470
          %s1472 = smul.addr %s1468, 2
          %s1473 = smul.addr %s23, 32
          %s1474 = sadd.s32 %s1472, %s1473
          %s1475 = smul.addr %s1474, 128
          %s1476 = scalar_lea.hbm %s5, %s1475
          %s1477 = sshll.u32 %s1464, 4
          %s1478 = int_to_ptr.vmem [resolvable:$true] %s1477
          %1483 = dma.vmem_to_hbm [thread:$0]  %s1478, 2048, %s1476, %s1461, 128, 128, 8
        $region44: #{tpu_custom_call.1} parent=39 // pred_fallthru
          _
      $region40: #{tpu_custom_call.1} parent=5 // pred_fallthru
        _
      %p1484 = scmp.le.s32.totalorder 2, %s14
      // Predicated region
      $region45: #{tpu_custom_call.1} parent=5 // pred_check
        %p1485 = pneg %p1484
      $region46: #{tpu_custom_call.1} parent=5 // pred_check_branch
        %1487 = sbr.rel (%p1485) target = $region48
      $region47: #{tpu_custom_call.1} parent=5 // pred_region
        %s1488 = ssub.s32 %s14, 2
        // Predicated region
        $region49: #{tpu_custom_call.1} parent=47 // pred_check
          %p1489 = pneg %p180
        $region50: #{tpu_custom_call.1} parent=47 // pred_check_branch
          %1491 = sbr.rel (%p1489) target = $region52
        $region51: #{tpu_custom_call.1} parent=47 // pred_region
          %s1492 = sand.u32 %s165, 1
          %s1493 = scalar_lea.sflag [#allocation3], %s1492
          %s1494 = sand.u32 %s165, 1
          %s1495 = smul.addr %s1494, 128
          %s1496 = scalar_lea.vmem [#allocation2], %s1495
          %1497 = dma.done %s1493, 2048
        $region52: #{tpu_custom_call.1} parent=47 // pred_fallthru
          _
      $region48: #{tpu_custom_call.1} parent=5 // pred_fallthru
        _
    $region6: #{tpu_custom_call.1} parent=1 // loop_footer
      %s18 = sadd.s32 1, %s14
    $region7: #{tpu_custom_call.1} parent=1 // loop_footer_branch
      %13 = sbr.rel target = $region3
    $region8: #{tpu_custom_call.1} parent=1 // loop_exit
      _
    %1498 = vsyncpa [#allocation3], 1
    %s1499 = scalar_lea.sflag [#allocation3], 1
    %1500 = vsyncpa %s1499, 1

</llo_original>
